<compile_context>
chip_gen: v6e
topology: v6e:2x2x1
jax: 0.10.0
libtpu: 0.0.40
codegen_flags: <defaults>
</compile_context>

<pallas_src>
import functools
import math

import jax
import jax.numpy as jnp
from jax import lax
from jax.experimental import pallas as pl
from jax.experimental.pallas import tpu as pltpu


# ------------------------------------------------------------------ kernel --

def _layer_norm(x, gamma, beta):
    # LayerNorm over the last dim, eps = 1e-5 (PyTorch default), f32 stats.
    mu = jnp.mean(x, axis=-1, keepdims=True)
    var = jnp.mean(jnp.square(x - mu), axis=-1, keepdims=True)
    return (x - mu) * lax.rsqrt(var + 1e-5) * gamma + beta


def _encoder_stack_kernel(
    x_ref, pos_ref,
    wqk_ref, bqk_ref, wv_ref, bv_ref, wo_ref, bo_ref,
    ln1g_ref, ln1b_ref,
    w1_ref, b1_ref, w2_ref, b2_ref,
    ln2g_ref, ln2b_ref,
    o_ref,
    *, nhead,
):
    layer = pl.program_id(1)
    TB, S, D = x_ref.shape                   # static block shape
    dh = D // nhead
    scale = 1.0 / math.sqrt(dh)
    rows = TB * S

    # Residual stream = resident output block (same block index across the
    # layer axis -> stays in VMEM, single HBM writeback per batch block).
    @pl.when(layer == 0)
    def _():
        o_ref[...] = x_ref[...]

    x3 = o_ref[...]                          # (TB, S, D) f32 residual stream
    x = x3.reshape(rows, D)
    pos = pos_ref[...].reshape(rows, D)

    # Hoisted bf16 casts (reused below).
    x_b = x.astype(jnp.bfloat16)
    qk_in = (x + pos).astype(jnp.bfloat16)

    # ---- graph self-attention: q = k = x + pos, v = x ----------------------
    qk = jnp.dot(qk_in, wqk_ref[0],
                 preferred_element_type=jnp.float32) + bqk_ref[0]   # (rows, 2D)
    v = jnp.dot(x_b, wv_ref[0],
                preferred_element_type=jnp.float32) + bv_ref[0]     # (rows, D)

    # Cast once, keep a TB batch dim for the attention contractions.
    qk3 = qk.reshape(TB, S, 2 * D).astype(jnp.bfloat16)
    v3 = v.reshape(TB, S, D).astype(jnp.bfloat16)

    ctx_parts = []
    for h in range(nhead):                    # static unroll over heads
        q_h = qk3[:, :, h * dh:(h + 1) * dh]              # (TB, S, dh)
        k_h = qk3[:, :, D + h * dh:D + (h + 1) * dh]      # (TB, S, dh)
        v_h = v3[:, :, h * dh:(h + 1) * dh]               # (TB, S, dh)
        # q @ k^T, batched over TB (contraction on dh; no explicit transpose).
        s = lax.dot_general(
            q_h, k_h, dimension_numbers=(((2,), (2,)), ((0,), (0,))),
            preferred_element_type=jnp.float32) * scale   # (TB, S, S)
        s = s - jnp.max(s, axis=-1, keepdims=True)
        p = jnp.exp(s)
        p = p * pl.reciprocal(jnp.sum(p, axis=-1, keepdims=True), approx=True)
        ctx_parts.append(lax.dot_general(
            p.astype(jnp.bfloat16), v_h,
            dimension_numbers=(((2,), (1,)), ((0,), (0,))),
            preferred_element_type=jnp.float32))          # (TB, S, dh)
    ctx = jnp.concatenate(ctx_parts, axis=-1).reshape(rows, D)

    attn = jnp.dot(ctx.astype(jnp.bfloat16), wo_ref[0],
                   preferred_element_type=jnp.float32) + bo_ref[0]

    # ---- residual + LayerNorm 1 (fused epilogue) ----------------------------
    y = _layer_norm(x + attn, ln1g_ref[0], ln1b_ref[0])

    # ---- FFN: linear2(leaky_relu(linear1(y))), dropout = identity ----------
    hdn = jnp.dot(y.astype(jnp.bfloat16), w1_ref[0],
                  preferred_element_type=jnp.float32) + b1_ref[0]
    hdn = jnp.where(hdn > 0, hdn, 0.01 * hdn)   # F.leaky_relu default slope
    ffn = jnp.dot(hdn.astype(jnp.bfloat16), w2_ref[0],
                  preferred_element_type=jnp.float32) + b2_ref[0]

    # ---- residual + LayerNorm 2, write back into the resident stream -------
    z = _layer_norm(y + ffn, ln2g_ref[0], ln2b_ref[0])
    o_ref[...] = z.reshape(TB, S, D)


# ----------------------------------------------------------------- wrapper --

def _choose_tb(B, S, target_rows=256):
    """Smallest divisor TB of B with TB*S >= target_rows (else TB = B)."""
    divisors = [tb for tb in range(1, B + 1) if B % tb == 0]
    for tb in divisors:
        if tb * S >= target_rows:
            return tb
    return divisors[-1]


def _vmem_limit_bytes(default=48 * 1024 * 1024):
    """~75% of physical VMEM, clamped to [32, 96] MiB; safe fallback."""
    try:
        cap = int(pltpu.get_tpu_info().vmem_capacity_bytes)
        if cap <= 0:
            return default
        return max(32 * 1024 * 1024, min((cap * 3) // 4, 96 * 1024 * 1024))
    except Exception:
        return default


def graph_transformer_encoder(params, src, pos, *, nhead):
    """src: (S, B, D), pos: (S, B, D) or None. Returns (S, B, D)."""
    S, B, D = src.shape
    L = params["wqk"].shape[0]

    TB = _choose_tb(B, S)                                      # B % TB == 0

    x_bf = jnp.transpose(src, (1, 0, 2))                       # (B, S, D)
    pos_bf = (jnp.zeros_like(x_bf) if pos is None
              else jnp.transpose(pos, (1, 0, 2)))              # (B, S, D)

    kernel = functools.partial(_encoder_stack_kernel, nhead=nhead)

    def per_batch():
        return pl.BlockSpec((TB, S, D), lambda b, l: (b, 0, 0))

    def per_layer(shape):
        return pl.BlockSpec((1,) + shape, lambda b, l: (l, 0, 0))

    Dff = params["w1"].shape[2]

    out = pl.pallas_call(
        kernel,
        out_shape=jax.ShapeDtypeStruct((B, S, D), jnp.float32),
        grid=(B // TB, L),
        in_specs=[
            per_batch(),                      # x
            per_batch(),                      # pos
            per_layer((D, 2 * D)),            # wqk (fused Q/K projection)
            per_layer((1, 2 * D)),            # bqk
            per_layer((D, D)),                # wv
            per_layer((1, D)),                # bv
            per_layer((D, D)),                # wo
            per_layer((1, D)),                # bo
            per_layer((1, D)),                # ln1 gamma
            per_layer((1, D)),                # ln1 beta
            per_layer((D, Dff)),              # w1
            per_layer((1, Dff)),              # b1
            per_layer((Dff, D)),              # w2
            per_layer((1, D)),                # b2
            per_layer((1, D)),                # ln2 gamma
            per_layer((1, D)),                # ln2 beta
        ],
        out_specs=per_batch(),
        compiler_params=pltpu.CompilerParams(
            dimension_semantics=("parallel", "arbitrary"),
            vmem_limit_bytes=_vmem_limit_bytes(),
        ),
    )(
        x_bf, pos_bf,
        params["wqk"], params["bqk"], params["wv"], params["bv"],
        params["wo"], params["bo"], params["ln1_g"], params["ln1_b"],
        params["w1"], params["b1"], params["w2"], params["b2"],
        params["ln2_g"], params["ln2_b"],
    )
    return jnp.transpose(out, (1, 0, 2))                       # (S, B, D)


# ------------------------------------------------------------------- params --

def init_params(key, num_layers, d_model, dim_ff):
    ks = jax.random.split(key, num_layers * 5)

    def w(k, shape):
        # bf16 weight storage (bf16 MXU operands, f32 accumulation in-kernel).
        return (0.02 * jax.random.normal(k, shape, jnp.float32)).astype(jnp.bfloat16)

    wqk, wv, wo, w1, w2 = [], [], [], [], []
    i = 0
    for _ in range(num_layers):
        wqk.append(w(ks[i], (d_model, 2 * d_model))); i += 1
        wv.append(w(ks[i], (d_model, d_model))); i += 1
        wo.append(w(ks[i], (d_model, d_model))); i += 1
        w1.append(w(ks[i], (d_model, dim_ff))); i += 1
        w2.append(w(ks[i], (dim_ff, d_model))); i += 1

    return {
        "wqk": jnp.stack(wqk),
        "bqk": jnp.zeros((num_layers, 1, 2 * d_model), jnp.float32),
        "wv": jnp.stack(wv),
        "bv": jnp.zeros((num_layers, 1, d_model), jnp.float32),
        "wo": jnp.stack(wo),
        "bo": jnp.zeros((num_layers, 1, d_model), jnp.float32),
        "ln1_g": jnp.ones((num_layers, 1, d_model), jnp.float32),
        "ln1_b": jnp.zeros((num_layers, 1, d_model), jnp.float32),
        "w1": jnp.stack(w1),
        "b1": jnp.zeros((num_layers, 1, dim_ff), jnp.float32),
        "w2": jnp.stack(w2),
        "b2": jnp.zeros((num_layers, 1, d_model), jnp.float32),
        "ln2_g": jnp.ones((num_layers, 1, d_model), jnp.float32),
        "ln2_b": jnp.zeros((num_layers, 1, d_model), jnp.float32),
    }


# --------------------------------------------------------------------- main --

if __name__ == "__main__":
    S, B, D = 8, 2, 32        # seq, batch, d_model
    NHEAD = 4
    DFF = 64
    NUM_LAYERS = 2

    key = jax.random.PRNGKey(0)
    k1, k2, k3 = jax.random.split(key, 3)
    src = jax.random.normal(k1, (S, B, D), jnp.float32)
    pos = jax.random.normal(k2, (S, B, D), jnp.float32)
    params = init_params(k3, NUM_LAYERS, D, DFF)

    fwd = jax.jit(functools.partial(graph_transformer_encoder, nhead=NHEAD))
    out = fwd(params, src, pos)
    jax.block_until_ready(out)

    assert out.shape == (S, B, D)
    assert bool(jnp.all(jnp.isfinite(out)))
    print("KERNEL_OK")
</pallas_src>

<mosaic_0001>
module attributes {stable_mosaic.version = 11 : i64} {
  func.func @_encoder_stack_kernel(%arg0: i32, %arg1: i32, %arg2: memref<2x8x32xf32, #tpu.memory_space<vmem>>, %arg3: memref<2x8x32xf32, #tpu.memory_space<vmem>>, %arg4: memref<1x32x64xbf16, #tpu.memory_space<vmem>>, %arg5: memref<1x1x64xf32, #tpu.memory_space<vmem>>, %arg6: memref<1x32x32xbf16, #tpu.memory_space<vmem>>, %arg7: memref<1x1x32xf32, #tpu.memory_space<vmem>>, %arg8: memref<1x32x32xbf16, #tpu.memory_space<vmem>>, %arg9: memref<1x1x32xf32, #tpu.memory_space<vmem>>, %arg10: memref<1x1x32xf32, #tpu.memory_space<vmem>>, %arg11: memref<1x1x32xf32, #tpu.memory_space<vmem>>, %arg12: memref<1x32x64xbf16, #tpu.memory_space<vmem>>, %arg13: memref<1x1x64xf32, #tpu.memory_space<vmem>>, %arg14: memref<1x64x32xbf16, #tpu.memory_space<vmem>>, %arg15: memref<1x1x32xf32, #tpu.memory_space<vmem>>, %arg16: memref<1x1x32xf32, #tpu.memory_space<vmem>>, %arg17: memref<1x1x32xf32, #tpu.memory_space<vmem>>, %arg18: memref<2x8x32xf32, #tpu.memory_space<vmem>>) attributes {dimension_semantics = [#tpu.dimension_semantics<parallel>, #tpu.dimension_semantics<arbitrary>], iteration_bounds = array<i64: 1, 2>, scalar_prefetch = 0 : i64, scratch_operands = 0 : i64, tpu.core_type = #tpu.core_type<tc>, window_params = [{transform_indices = @transform_0, window_bounds = array<i64: 2, 8, 32>}, {transform_indices = @transform_1, window_bounds = array<i64: 2, 8, 32>}, {transform_indices = @transform_2, window_bounds = array<i64: 1, 32, 64>}, {transform_indices = @transform_3, window_bounds = array<i64: 1, 1, 64>}, {transform_indices = @transform_4, window_bounds = array<i64: 1, 32, 32>}, {transform_indices = @transform_5, window_bounds = array<i64: 1, 1, 32>}, {transform_indices = @transform_6, window_bounds = array<i64: 1, 32, 32>}, {transform_indices = @transform_7, window_bounds = array<i64: 1, 1, 32>}, {transform_indices = @transform_8, window_bounds = array<i64: 1, 1, 32>}, {transform_indices = @transform_9, window_bounds = array<i64: 1, 1, 32>}, {transform_indices = @transform_10, window_bounds = array<i64: 1, 32, 64>}, {transform_indices = @transform_11, window_bounds = array<i64: 1, 1, 64>}, {transform_indices = @transform_12, window_bounds = array<i64: 1, 64, 32>}, {transform_indices = @transform_13, window_bounds = array<i64: 1, 1, 32>}, {transform_indices = @transform_14, window_bounds = array<i64: 1, 1, 32>}, {transform_indices = @transform_15, window_bounds = array<i64: 1, 1, 32>}, {transform_indices = @transform_16, window_bounds = array<i64: 2, 8, 32>}]} {
    %c0_i32 = arith.constant 0 : i32
    %0 = arith.cmpi eq, %arg1, %c0_i32 : i32
    %1 = arith.extui %0 : i1 to i32
    %c0_i32_0 = arith.constant 0 : i32
    %2 = arith.cmpi ne, %1, %c0_i32_0 : i32
    scf.if %2 {
      %c0_87 = arith.constant 0 : index
      %c0_88 = arith.constant 0 : index
      %c0_89 = arith.constant 0 : index
      %187 = vector.load %arg2[%c0_87, %c0_88, %c0_89] : memref<2x8x32xf32, #tpu.memory_space<vmem>>, vector<2x8x32xf32>
      %c0_90 = arith.constant 0 : index
      %c0_91 = arith.constant 0 : index
      %c0_92 = arith.constant 0 : index
      %188 = vector.load %arg18[%c0_90, %c0_91, %c0_92] : memref<2x8x32xf32, #tpu.memory_space<vmem>>, vector<2x8x32xf32>
      tpu.vector_store %arg18[%c0_90, %c0_91, %c0_92], %187 {strides = array<i32>} : memref<2x8x32xf32, #tpu.memory_space<vmem>>, vector<2x8x32xf32>,
    } else {
    }
    %c0 = arith.constant 0 : index
    %c0_1 = arith.constant 0 : index
    %c0_2 = arith.constant 0 : index
    %3 = vector.load %arg18[%c0, %c0_1, %c0_2] : memref<2x8x32xf32, #tpu.memory_space<vmem>>, vector<2x8x32xf32>
    %4 = vector.shape_cast %3 : vector<2x8x32xf32> to vector<16x32xf32>
    %c0_3 = arith.constant 0 : index
    %c0_4 = arith.constant 0 : index
    %c0_5 = arith.constant 0 : index
    %5 = vector.load %arg3[%c0_3, %c0_4, %c0_5] : memref<2x8x32xf32, #tpu.memory_space<vmem>>, vector<2x8x32xf32>
    %6 = vector.shape_cast %5 : vector<2x8x32xf32> to vector<16x32xf32>
    %7 = arith.truncf %4 : vector<16x32xf32> to vector<16x32xbf16>
    %8 = arith.addf %4, %6 : vector<16x32xf32>
    %9 = arith.truncf %8 : vector<16x32xf32> to vector<16x32xbf16>
    %c0_6 = arith.constant 0 : index
    %c0_7 = arith.constant 0 : index
    %c0_8 = arith.constant 0 : index
    %10 = vector.load %arg4[%c0_6, %c0_7, %c0_8] : memref<1x32x64xbf16, #tpu.memory_space<vmem>>, vector<1x32x64xbf16>
    %11 = vector.shape_cast %10 : vector<1x32x64xbf16> to vector<32x64xbf16>
    %cst = arith.constant dense<0.000000e+00> : vector<16x64xf32>
    %12 = tpu.matmul %9, %11, %cst {dimension_numbers = #tpu.dot_dimension_numbers<[1], [0], [0], [1], [0, 0, 1, 1], [], []>} : vector<16x32xbf16>, vector<32x64xbf16>, vector<16x64xf32> -> vector<16x64xf32>
    %c0_9 = arith.constant 0 : index
    %c0_10 = arith.constant 0 : index
    %c0_11 = arith.constant 0 : index
    %13 = vector.load %arg5[%c0_9, %c0_10, %c0_11] : memref<1x1x64xf32, #tpu.memory_space<vmem>>, vector<1x1x64xf32>
    %14 = vector.shape_cast %13 : vector<1x1x64xf32> to vector<1x64xf32>
    %15 = vector.broadcast %14 : vector<1x64xf32> to vector<16x64xf32>
    %16 = arith.addf %12, %15 : vector<16x64xf32>
    %c0_12 = arith.constant 0 : index
    %c0_13 = arith.constant 0 : index
    %c0_14 = arith.constant 0 : index
    %17 = vector.load %arg6[%c0_12, %c0_13, %c0_14] : memref<1x32x32xbf16, #tpu.memory_space<vmem>>, vector<1x32x32xbf16>
    %18 = vector.shape_cast %17 : vector<1x32x32xbf16> to vector<32x32xbf16>
    %cst_15 = arith.constant dense<0.000000e+00> : vector<16x32xf32>
    %19 = tpu.matmul %7, %18, %cst_15 {dimension_numbers = #tpu.dot_dimension_numbers<[1], [0], [0], [1], [0, 0, 1, 1], [], []>} : vector<16x32xbf16>, vector<32x32xbf16>, vector<16x32xf32> -> vector<16x32xf32>
    %c0_16 = arith.constant 0 : index
    %c0_17 = arith.constant 0 : index
    %c0_18 = arith.constant 0 : index
    %20 = vector.load %arg7[%c0_16, %c0_17, %c0_18] : memref<1x1x32xf32, #tpu.memory_space<vmem>>, vector<1x1x32xf32>
    %21 = vector.shape_cast %20 : vector<1x1x32xf32> to vector<1x32xf32>
    %22 = vector.broadcast %21 : vector<1x32xf32> to vector<16x32xf32>
    %23 = arith.addf %19, %22 : vector<16x32xf32>
    %24 = vector.shape_cast %16 : vector<16x64xf32> to vector<2x8x64xf32>
    %25 = arith.truncf %24 : vector<2x8x64xf32> to vector<2x8x64xbf16>
    %26 = vector.shape_cast %23 : vector<16x32xf32> to vector<2x8x32xf32>
    %27 = arith.truncf %26 : vector<2x8x32xf32> to vector<2x8x32xbf16>
    %28 = vector.extract_strided_slice %25 {offsets = [0, 0, 0], sizes = [2, 8, 8], strides = [1, 1, 1]} : vector<2x8x64xbf16> to vector<2x8x8xbf16>
    %29 = vector.extract_strided_slice %25 {offsets = [0, 0, 32], sizes = [2, 8, 8], strides = [1, 1, 1]} : vector<2x8x64xbf16> to vector<2x8x8xbf16>
    %30 = vector.extract_strided_slice %27 {offsets = [0, 0, 0], sizes = [2, 8, 8], strides = [1, 1, 1]} : vector<2x8x32xbf16> to vector<2x8x8xbf16>
    %cst_19 = arith.constant dense<0.000000e+00> : vector<2x8x8xf32>
    %31 = tpu.matmul %28, %29, %cst_19 {dimension_numbers = #tpu.dot_dimension_numbers<[2], [2], [1], [1], [0, 0, 0, 1, 1, 1], [0], [0]>} : vector<2x8x8xbf16>, vector<2x8x8xbf16>, vector<2x8x8xf32> -> vector<2x8x8xf32>
    %cst_20 = arith.constant 0.353553385 : f32
    %32 = vector.broadcast %cst_20 : f32 to vector<2x8x8xf32>
    %33 = arith.mulf %31, %32 : vector<2x8x8xf32>
    %cst_21 = arith.constant dense<0xFF800000> : vector<2x8xf32>
    %34 = vector.multi_reduction <maximumf>, %33, %cst_21 [2] : vector<2x8x8xf32> to vector<2x8xf32>
    %35 = vector.shape_cast %34 : vector<2x8xf32> to vector<2x8x1xf32>
    %36 = vector.broadcast %35 : vector<2x8x1xf32> to vector<2x8x8xf32>
    %37 = arith.subf %33, %36 : vector<2x8x8xf32>
    %38 = math.exp %37 : vector<2x8x8xf32>
    %cst_22 = arith.constant dense<0.000000e+00> : vector<2x8xf32>
    %39 = vector.multi_reduction <add>, %38, %cst_22 [2] : vector<2x8x8xf32> to vector<2x8xf32>
    %40 = vector.shape_cast %39 : vector<2x8xf32> to vector<2x8x1xf32>
    %41 = tpu.reciprocal %40 {approx = true} : vector<2x8x1xf32> -> vector<2x8x1xf32>
    %42 = vector.broadcast %41 : vector<2x8x1xf32> to vector<2x8x8xf32>
    %43 = arith.mulf %38, %42 : vector<2x8x8xf32>
    %44 = arith.truncf %43 : vector<2x8x8xf32> to vector<2x8x8xbf16>
    %cst_23 = arith.constant dense<0.000000e+00> : vector<2x8x8xf32>
    %45 = tpu.matmul %44, %30, %cst_23 {dimension_numbers = #tpu.dot_dimension_numbers<[2], [1], [1], [2], [0, 0, 0, 1, 1, 2], [0], [0]>} : vector<2x8x8xbf16>, vector<2x8x8xbf16>, vector<2x8x8xf32> -> vector<2x8x8xf32>
    %46 = vector.extract_strided_slice %25 {offsets = [0, 0, 8], sizes = [2, 8, 8], strides = [1, 1, 1]} : vector<2x8x64xbf16> to vector<2x8x8xbf16>
    %47 = vector.extract_strided_slice %25 {offsets = [0, 0, 40], sizes = [2, 8, 8], strides = [1, 1, 1]} : vector<2x8x64xbf16> to vector<2x8x8xbf16>
    %48 = vector.extract_strided_slice %27 {offsets = [0, 0, 8], sizes = [2, 8, 8], strides = [1, 1, 1]} : vector<2x8x32xbf16> to vector<2x8x8xbf16>
    %cst_24 = arith.constant dense<0.000000e+00> : vector<2x8x8xf32>
    %49 = tpu.matmul %46, %47, %cst_24 {dimension_numbers = #tpu.dot_dimension_numbers<[2], [2], [1], [1], [0, 0, 0, 1, 1, 1], [0], [0]>} : vector<2x8x8xbf16>, vector<2x8x8xbf16>, vector<2x8x8xf32> -> vector<2x8x8xf32>
    %cst_25 = arith.constant 0.353553385 : f32
    %50 = vector.broadcast %cst_25 : f32 to vector<2x8x8xf32>
    %51 = arith.mulf %49, %50 : vector<2x8x8xf32>
    %cst_26 = arith.constant dense<0xFF800000> : vector<2x8xf32>
    %52 = vector.multi_reduction <maximumf>, %51, %cst_26 [2] : vector<2x8x8xf32> to vector<2x8xf32>
    %53 = vector.shape_cast %52 : vector<2x8xf32> to vector<2x8x1xf32>
    %54 = vector.broadcast %53 : vector<2x8x1xf32> to vector<2x8x8xf32>
    %55 = arith.subf %51, %54 : vector<2x8x8xf32>
    %56 = math.exp %55 : vector<2x8x8xf32>
    %cst_27 = arith.constant dense<0.000000e+00> : vector<2x8xf32>
    %57 = vector.multi_reduction <add>, %56, %cst_27 [2] : vector<2x8x8xf32> to vector<2x8xf32>
    %58 = vector.shape_cast %57 : vector<2x8xf32> to vector<2x8x1xf32>
    %59 = tpu.reciprocal %58 {approx = true} : vector<2x8x1xf32> -> vector<2x8x1xf32>
    %60 = vector.broadcast %59 : vector<2x8x1xf32> to vector<2x8x8xf32>
    %61 = arith.mulf %56, %60 : vector<2x8x8xf32>
    %62 = arith.truncf %61 : vector<2x8x8xf32> to vector<2x8x8xbf16>
    %cst_28 = arith.constant dense<0.000000e+00> : vector<2x8x8xf32>
    %63 = tpu.matmul %62, %48, %cst_28 {dimension_numbers = #tpu.dot_dimension_numbers<[2], [1], [1], [2], [0, 0, 0, 1, 1, 2], [0], [0]>} : vector<2x8x8xbf16>, vector<2x8x8xbf16>, vector<2x8x8xf32> -> vector<2x8x8xf32>
    %64 = vector.extract_strided_slice %25 {offsets = [0, 0, 16], sizes = [2, 8, 8], strides = [1, 1, 1]} : vector<2x8x64xbf16> to vector<2x8x8xbf16>
    %65 = vector.extract_strided_slice %25 {offsets = [0, 0, 48], sizes = [2, 8, 8], strides = [1, 1, 1]} : vector<2x8x64xbf16> to vector<2x8x8xbf16>
    %66 = vector.extract_strided_slice %27 {offsets = [0, 0, 16], sizes = [2, 8, 8], strides = [1, 1, 1]} : vector<2x8x32xbf16> to vector<2x8x8xbf16>
    %cst_29 = arith.constant dense<0.000000e+00> : vector<2x8x8xf32>
    %67 = tpu.matmul %64, %65, %cst_29 {dimension_numbers = #tpu.dot_dimension_numbers<[2], [2], [1], [1], [0, 0, 0, 1, 1, 1], [0], [0]>} : vector<2x8x8xbf16>, vector<2x8x8xbf16>, vector<2x8x8xf32> -> vector<2x8x8xf32>
    %cst_30 = arith.constant 0.353553385 : f32
    %68 = vector.broadcast %cst_30 : f32 to vector<2x8x8xf32>
    %69 = arith.mulf %67, %68 : vector<2x8x8xf32>
    %cst_31 = arith.constant dense<0xFF800000> : vector<2x8xf32>
    %70 = vector.multi_reduction <maximumf>, %69, %cst_31 [2] : vector<2x8x8xf32> to vector<2x8xf32>
    %71 = vector.shape_cast %70 : vector<2x8xf32> to vector<2x8x1xf32>
    %72 = vector.broadcast %71 : vector<2x8x1xf32> to vector<2x8x8xf32>
    %73 = arith.subf %69, %72 : vector<2x8x8xf32>
    %74 = math.exp %73 : vector<2x8x8xf32>
    %cst_32 = arith.constant dense<0.000000e+00> : vector<2x8xf32>
    %75 = vector.multi_reduction <add>, %74, %cst_32 [2] : vector<2x8x8xf32> to vector<2x8xf32>
    %76 = vector.shape_cast %75 : vector<2x8xf32> to vector<2x8x1xf32>
    %77 = tpu.reciprocal %76 {approx = true} : vector<2x8x1xf32> -> vector<2x8x1xf32>
    %78 = vector.broadcast %77 : vector<2x8x1xf32> to vector<2x8x8xf32>
    %79 = arith.mulf %74, %78 : vector<2x8x8xf32>
    %80 = arith.truncf %79 : vector<2x8x8xf32> to vector<2x8x8xbf16>
    %cst_33 = arith.constant dense<0.000000e+00> : vector<2x8x8xf32>
    %81 = tpu.matmul %80, %66, %cst_33 {dimension_numbers = #tpu.dot_dimension_numbers<[2], [1], [1], [2], [0, 0, 0, 1, 1, 2], [0], [0]>} : vector<2x8x8xbf16>, vector<2x8x8xbf16>, vector<2x8x8xf32> -> vector<2x8x8xf32>
    %82 = vector.extract_strided_slice %25 {offsets = [0, 0, 24], sizes = [2, 8, 8], strides = [1, 1, 1]} : vector<2x8x64xbf16> to vector<2x8x8xbf16>
    %83 = vector.extract_strided_slice %25 {offsets = [0, 0, 56], sizes = [2, 8, 8], strides = [1, 1, 1]} : vector<2x8x64xbf16> to vector<2x8x8xbf16>
    %84 = vector.extract_strided_slice %27 {offsets = [0, 0, 24], sizes = [2, 8, 8], strides = [1, 1, 1]} : vector<2x8x32xbf16> to vector<2x8x8xbf16>
    %cst_34 = arith.constant dense<0.000000e+00> : vector<2x8x8xf32>
    %85 = tpu.matmul %82, %83, %cst_34 {dimension_numbers = #tpu.dot_dimension_numbers<[2], [2], [1], [1], [0, 0, 0, 1, 1, 1], [0], [0]>} : vector<2x8x8xbf16>, vector<2x8x8xbf16>, vector<2x8x8xf32> -> vector<2x8x8xf32>
    %cst_35 = arith.constant 0.353553385 : f32
    %86 = vector.broadcast %cst_35 : f32 to vector<2x8x8xf32>
    %87 = arith.mulf %85, %86 : vector<2x8x8xf32>
    %cst_36 = arith.constant dense<0xFF800000> : vector<2x8xf32>
    %88 = vector.multi_reduction <maximumf>, %87, %cst_36 [2] : vector<2x8x8xf32> to vector<2x8xf32>
    %89 = vector.shape_cast %88 : vector<2x8xf32> to vector<2x8x1xf32>
    %90 = vector.broadcast %89 : vector<2x8x1xf32> to vector<2x8x8xf32>
    %91 = arith.subf %87, %90 : vector<2x8x8xf32>
    %92 = math.exp %91 : vector<2x8x8xf32>
    %cst_37 = arith.constant dense<0.000000e+00> : vector<2x8xf32>
    %93 = vector.multi_reduction <add>, %92, %cst_37 [2] : vector<2x8x8xf32> to vector<2x8xf32>
    %94 = vector.shape_cast %93 : vector<2x8xf32> to vector<2x8x1xf32>
    %95 = tpu.reciprocal %94 {approx = true} : vector<2x8x1xf32> -> vector<2x8x1xf32>
    %96 = vector.broadcast %95 : vector<2x8x1xf32> to vector<2x8x8xf32>
    %97 = arith.mulf %92, %96 : vector<2x8x8xf32>
    %98 = arith.truncf %97 : vector<2x8x8xf32> to vector<2x8x8xbf16>
    %cst_38 = arith.constant dense<0.000000e+00> : vector<2x8x8xf32>
    %99 = tpu.matmul %98, %84, %cst_38 {dimension_numbers = #tpu.dot_dimension_numbers<[2], [1], [1], [2], [0, 0, 0, 1, 1, 2], [0], [0]>} : vector<2x8x8xbf16>, vector<2x8x8xbf16>, vector<2x8x8xf32> -> vector<2x8x8xf32>
    %100 = tpu.concatenate %45, %63, %81, %99 in 2 : vector<2x8x8xf32>, vector<2x8x8xf32>, vector<2x8x8xf32>, vector<2x8x8xf32> -> vector<2x8x32xf32>
    %101 = vector.shape_cast %100 : vector<2x8x32xf32> to vector<16x32xf32>
    %102 = arith.truncf %101 : vector<16x32xf32> to vector<16x32xbf16>
    %c0_39 = arith.constant 0 : index
    %c0_40 = arith.constant 0 : index
    %c0_41 = arith.constant 0 : index
    %103 = vector.load %arg8[%c0_39, %c0_40, %c0_41] : memref<1x32x32xbf16, #tpu.memory_space<vmem>>, vector<1x32x32xbf16>
    %104 = vector.shape_cast %103 : vector<1x32x32xbf16> to vector<32x32xbf16>
    %cst_42 = arith.constant dense<0.000000e+00> : vector<16x32xf32>
    %105 = tpu.matmul %102, %104, %cst_42 {dimension_numbers = #tpu.dot_dimension_numbers<[1], [0], [0], [1], [0, 0, 1, 1], [], []>} : vector<16x32xbf16>, vector<32x32xbf16>, vector<16x32xf32> -> vector<16x32xf32>
    %c0_43 = arith.constant 0 : index
    %c0_44 = arith.constant 0 : index
    %c0_45 = arith.constant 0 : index
    %106 = vector.load %arg9[%c0_43, %c0_44, %c0_45] : memref<1x1x32xf32, #tpu.memory_space<vmem>>, vector<1x1x32xf32>
    %107 = vector.shape_cast %106 : vector<1x1x32xf32> to vector<1x32xf32>
    %108 = vector.broadcast %107 : vector<1x32xf32> to vector<16x32xf32>
    %109 = arith.addf %105, %108 : vector<16x32xf32>
    %110 = arith.addf %4, %109 : vector<16x32xf32>
    %c0_46 = arith.constant 0 : index
    %c0_47 = arith.constant 0 : index
    %c0_48 = arith.constant 0 : index
    %111 = vector.load %arg10[%c0_46, %c0_47, %c0_48] : memref<1x1x32xf32, #tpu.memory_space<vmem>>, vector<1x1x32xf32>
    %112 = vector.shape_cast %111 : vector<1x1x32xf32> to vector<1x32xf32>
    %c0_49 = arith.constant 0 : index
    %c0_50 = arith.constant 0 : index
    %c0_51 = arith.constant 0 : index
    %113 = vector.load %arg11[%c0_49, %c0_50, %c0_51] : memref<1x1x32xf32, #tpu.memory_space<vmem>>, vector<1x1x32xf32>
    %114 = vector.shape_cast %113 : vector<1x1x32xf32> to vector<1x32xf32>
    %cst_52 = arith.constant dense<0.000000e+00> : vector<16xf32>
    %115 = vector.multi_reduction <add>, %110, %cst_52 [1] : vector<16x32xf32> to vector<16xf32>
    %116 = vector.shape_cast %115 : vector<16xf32> to vector<16x1xf32>
    %cst_53 = arith.constant 3.200000e+01 : f32
    %117 = vector.broadcast %cst_53 : f32 to vector<16x1xf32>
    %118 = arith.divf %116, %117 : vector<16x1xf32>
    %119 = vector.broadcast %118 : vector<16x1xf32> to vector<16x32xf32>
    %120 = arith.subf %110, %119 : vector<16x32xf32>
    %121 = arith.mulf %120, %120 : vector<16x32xf32>
    %cst_54 = arith.constant dense<0.000000e+00> : vector<16xf32>
    %122 = vector.multi_reduction <add>, %121, %cst_54 [1] : vector<16x32xf32> to vector<16xf32>
    %123 = vector.shape_cast %122 : vector<16xf32> to vector<16x1xf32>
    %cst_55 = arith.constant 3.200000e+01 : f32
    %124 = vector.broadcast %cst_55 : f32 to vector<16x1xf32>
    %125 = arith.divf %123, %124 : vector<16x1xf32>
    %126 = vector.broadcast %118 : vector<16x1xf32> to vector<16x32xf32>
    %127 = arith.subf %110, %126 : vector<16x32xf32>
    %cst_56 = arith.constant 9.99999974E-6 : f32
    %128 = vector.broadcast %cst_56 : f32 to vector<16x1xf32>
    %129 = arith.addf %125, %128 : vector<16x1xf32>
    %130 = math.rsqrt %129 : vector<16x1xf32>
    %131 = vector.broadcast %130 : vector<16x1xf32> to vector<16x32xf32>
    %132 = arith.mulf %127, %131 : vector<16x32xf32>
    %133 = vector.broadcast %112 : vector<1x32xf32> to vector<16x32xf32>
    %134 = arith.mulf %132, %133 : vector<16x32xf32>
    %135 = vector.broadcast %114 : vector<1x32xf32> to vector<16x32xf32>
    %136 = arith.addf %134, %135 : vector<16x32xf32>
    %137 = arith.truncf %136 : vector<16x32xf32> to vector<16x32xbf16>
    %c0_57 = arith.constant 0 : index
    %c0_58 = arith.constant 0 : index
    %c0_59 = arith.constant 0 : index
    %138 = vector.load %arg12[%c0_57, %c0_58, %c0_59] : memref<1x32x64xbf16, #tpu.memory_space<vmem>>, vector<1x32x64xbf16>
    %139 = vector.shape_cast %138 : vector<1x32x64xbf16> to vector<32x64xbf16>
    %cst_60 = arith.constant dense<0.000000e+00> : vector<16x64xf32>
    %140 = tpu.matmul %137, %139, %cst_60 {dimension_numbers = #tpu.dot_dimension_numbers<[1], [0], [0], [1], [0, 0, 1, 1], [], []>} : vector<16x32xbf16>, vector<32x64xbf16>, vector<16x64xf32> -> vector<16x64xf32>
    %c0_61 = arith.constant 0 : index
    %c0_62 = arith.constant 0 : index
    %c0_63 = arith.constant 0 : index
    %141 = vector.load %arg13[%c0_61, %c0_62, %c0_63] : memref<1x1x64xf32, #tpu.memory_space<vmem>>, vector<1x1x64xf32>
    %142 = vector.shape_cast %141 : vector<1x1x64xf32> to vector<1x64xf32>
    %143 = vector.broadcast %142 : vector<1x64xf32> to vector<16x64xf32>
    %144 = arith.addf %140, %143 : vector<16x64xf32>
    %cst_64 = arith.constant 0.000000e+00 : f32
    %145 = vector.broadcast %cst_64 : f32 to vector<16x64xf32>
    %146 = arith.cmpf ogt, %144, %145 : vector<16x64xf32>
    %cst_65 = arith.constant 0.00999999977 : f32
    %147 = vector.broadcast %cst_65 : f32 to vector<16x64xf32>
    %148 = arith.mulf %147, %144 : vector<16x64xf32>
    %149 = arith.select %146, %144, %148 : vector<16x64xi1>, vector<16x64xf32>
    %150 = arith.truncf %149 : vector<16x64xf32> to vector<16x64xbf16>
    %c0_66 = arith.constant 0 : index
    %c0_67 = arith.constant 0 : index
    %c0_68 = arith.constant 0 : index
    %151 = vector.load %arg14[%c0_66, %c0_67, %c0_68] : memref<1x64x32xbf16, #tpu.memory_space<vmem>>, vector<1x64x32xbf16>
    %152 = vector.shape_cast %151 : vector<1x64x32xbf16> to vector<64x32xbf16>
    %cst_69 = arith.constant dense<0.000000e+00> : vector<16x32xf32>
    %153 = tpu.matmul %150, %152, %cst_69 {dimension_numbers = #tpu.dot_dimension_numbers<[1], [0], [0], [1], [0, 0, 1, 1], [], []>} : vector<16x64xbf16>, vector<64x32xbf16>, vector<16x32xf32> -> vector<16x32xf32>
    %c0_70 = arith.constant 0 : index
    %c0_71 = arith.constant 0 : index
    %c0_72 = arith.constant 0 : index
    %154 = vector.load %arg15[%c0_70, %c0_71, %c0_72] : memref<1x1x32xf32, #tpu.memory_space<vmem>>, vector<1x1x32xf32>
    %155 = vector.shape_cast %154 : vector<1x1x32xf32> to vector<1x32xf32>
    %156 = vector.broadcast %155 : vector<1x32xf32> to vector<16x32xf32>
    %157 = arith.addf %153, %156 : vector<16x32xf32>
    %158 = arith.addf %136, %157 : vector<16x32xf32>
    %c0_73 = arith.constant 0 : index
    %c0_74 = arith.constant 0 : index
    %c0_75 = arith.constant 0 : index
    %159 = vector.load %arg16[%c0_73, %c0_74, %c0_75] : memref<1x1x32xf32, #tpu.memory_space<vmem>>, vector<1x1x32xf32>
    %160 = vector.shape_cast %159 : vector<1x1x32xf32> to vector<1x32xf32>
    %c0_76 = arith.constant 0 : index
    %c0_77 = arith.constant 0 : index
    %c0_78 = arith.constant 0 : index
    %161 = vector.load %arg17[%c0_76, %c0_77, %c0_78] : memref<1x1x32xf32, #tpu.memory_space<vmem>>, vector<1x1x32xf32>
    %162 = vector.shape_cast %161 : vector<1x1x32xf32> to vector<1x32xf32>
    %cst_79 = arith.constant dense<0.000000e+00> : vector<16xf32>
    %163 = vector.multi_reduction <add>, %158, %cst_79 [1] : vector<16x32xf32> to vector<16xf32>
    %164 = vector.shape_cast %163 : vector<16xf32> to vector<16x1xf32>
    %cst_80 = arith.constant 3.200000e+01 : f32
    %165 = vector.broadcast %cst_80 : f32 to vector<16x1xf32>
    %166 = arith.divf %164, %165 : vector<16x1xf32>
    %167 = vector.broadcast %166 : vector<16x1xf32> to vector<16x32xf32>
    %168 = arith.subf %158, %167 : vector<16x32xf32>
    %169 = arith.mulf %168, %168 : vector<16x32xf32>
    %cst_81 = arith.constant dense<0.000000e+00> : vector<16xf32>
    %170 = vector.multi_reduction <add>, %169, %cst_81 [1] : vector<16x32xf32> to vector<16xf32>
    %171 = vector.shape_cast %170 : vector<16xf32> to vector<16x1xf32>
    %cst_82 = arith.constant 3.200000e+01 : f32
    %172 = vector.broadcast %cst_82 : f32 to vector<16x1xf32>
    %173 = arith.divf %171, %172 : vector<16x1xf32>
    %174 = vector.broadcast %166 : vector<16x1xf32> to vector<16x32xf32>
    %175 = arith.subf %158, %174 : vector<16x32xf32>
    %cst_83 = arith.constant 9.99999974E-6 : f32
    %176 = vector.broadcast %cst_83 : f32 to vector<16x1xf32>
    %177 = arith.addf %173, %176 : vector<16x1xf32>
    %178 = math.rsqrt %177 : vector<16x1xf32>
    %179 = vector.broadcast %178 : vector<16x1xf32> to vector<16x32xf32>
    %180 = arith.mulf %175, %179 : vector<16x32xf32>
    %181 = vector.broadcast %160 : vector<1x32xf32> to vector<16x32xf32>
    %182 = arith.mulf %180, %181 : vector<16x32xf32>
    %183 = vector.broadcast %162 : vector<1x32xf32> to vector<16x32xf32>
    %184 = arith.addf %182, %183 : vector<16x32xf32>
    %185 = vector.shape_cast %184 : vector<16x32xf32> to vector<2x8x32xf32>
    %c0_84 = arith.constant 0 : index
    %c0_85 = arith.constant 0 : index
    %c0_86 = arith.constant 0 : index
    %186 = vector.load %arg18[%c0_84, %c0_85, %c0_86] : memref<2x8x32xf32, #tpu.memory_space<vmem>>, vector<2x8x32xf32>
    tpu.vector_store %arg18[%c0_84, %c0_85, %c0_86], %185 {strides = array<i32>} : memref<2x8x32xf32, #tpu.memory_space<vmem>>, vector<2x8x32xf32>,
    return
  }
  func.func @transform_0(%arg0: i32, %arg1: i32) -> (i32, i32, i32) {
    %c0_i32 = arith.constant 0 : i32
    %c0_i32_0 = arith.constant 0 : i32
    %c0_i32_1 = arith.constant 0 : i32
    return %arg0, %c0_i32, %c0_i32_0 : i32, i32, i32
  }
  func.func @transform_1(%arg0: i32, %arg1: i32) -> (i32, i32, i32) {
    %c0_i32 = arith.constant 0 : i32
    %c0_i32_0 = arith.constant 0 : i32
    %c0_i32_1 = arith.constant 0 : i32
    return %arg0, %c0_i32, %c0_i32_0 : i32, i32, i32
  }
  func.func @transform_2(%arg0: i32, %arg1: i32) -> (i32, i32, i32) {
    %c0_i32 = arith.constant 0 : i32
    %c0_i32_0 = arith.constant 0 : i32
    %c0_i32_1 = arith.constant 0 : i32
    return %arg1, %c0_i32, %c0_i32_0 : i32, i32, i32
  }
  func.func @transform_3(%arg0: i32, %arg1: i32) -> (i32, i32, i32) {
    %c0_i32 = arith.constant 0 : i32
    %c0_i32_0 = arith.constant 0 : i32
    %c0_i32_1 = arith.constant 0 : i32
    return %arg1, %c0_i32, %c0_i32_0 : i32, i32, i32
  }
  func.func @transform_4(%arg0: i32, %arg1: i32) -> (i32, i32, i32) {
    %c0_i32 = arith.constant 0 : i32
    %c0_i32_0 = arith.constant 0 : i32
    %c0_i32_1 = arith.constant 0 : i32
    return %arg1, %c0_i32, %c0_i32_0 : i32, i32, i32
  }
  func.func @transform_5(%arg0: i32, %arg1: i32) -> (i32, i32, i32) {
    %c0_i32 = arith.constant 0 : i32
    %c0_i32_0 = arith.constant 0 : i32
    %c0_i32_1 = arith.constant 0 : i32
    return %arg1, %c0_i32, %c0_i32_0 : i32, i32, i32
  }
  func.func @transform_6(%arg0: i32, %arg1: i32) -> (i32, i32, i32) {
    %c0_i32 = arith.constant 0 : i32
    %c0_i32_0 = arith.constant 0 : i32
    %c0_i32_1 = arith.constant 0 : i32
    return %arg1, %c0_i32, %c0_i32_0 : i32, i32, i32
  }
  func.func @transform_7(%arg0: i32, %arg1: i32) -> (i32, i32, i32) {
    %c0_i32 = arith.constant 0 : i32
    %c0_i32_0 = arith.constant 0 : i32
    %c0_i32_1 = arith.constant 0 : i32
    return %arg1, %c0_i32, %c0_i32_0 : i32, i32, i32
  }
  func.func @transform_8(%arg0: i32, %arg1: i32) -> (i32, i32, i32) {
    %c0_i32 = arith.constant 0 : i32
    %c0_i32_0 = arith.constant 0 : i32
    %c0_i32_1 = arith.constant 0 : i32
    return %arg1, %c0_i32, %c0_i32_0 : i32, i32, i32
  }
  func.func @transform_9(%arg0: i32, %arg1: i32) -> (i32, i32, i32) {
    %c0_i32 = arith.constant 0 : i32
    %c0_i32_0 = arith.constant 0 : i32
    %c0_i32_1 = arith.constant 0 : i32
    return %arg1, %c0_i32, %c0_i32_0 : i32, i32, i32
  }
  func.func @transform_10(%arg0: i32, %arg1: i32) -> (i32, i32, i32) {
    %c0_i32 = arith.constant 0 : i32
    %c0_i32_0 = arith.constant 0 : i32
    %c0_i32_1 = arith.constant 0 : i32
    return %arg1, %c0_i32, %c0_i32_0 : i32, i32, i32
  }
  func.func @transform_11(%arg0: i32, %arg1: i32) -> (i32, i32, i32) {
    %c0_i32 = arith.constant 0 : i32
    %c0_i32_0 = arith.constant 0 : i32
    %c0_i32_1 = arith.constant 0 : i32
    return %arg1, %c0_i32, %c0_i32_0 : i32, i32, i32
  }
  func.func @transform_12(%arg0: i32, %arg1: i32) -> (i32, i32, i32) {
    %c0_i32 = arith.constant 0 : i32
    %c0_i32_0 = arith.constant 0 : i32
    %c0_i32_1 = arith.constant 0 : i32
    return %arg1, %c0_i32, %c0_i32_0 : i32, i32, i32
  }
  func.func @transform_13(%arg0: i32, %arg1: i32) -> (i32, i32, i32) {
    %c0_i32 = arith.constant 0 : i32
    %c0_i32_0 = arith.constant 0 : i32
    %c0_i32_1 = arith.constant 0 : i32
    return %arg1, %c0_i32, %c0_i32_0 : i32, i32, i32
  }
  func.func @transform_14(%arg0: i32, %arg1: i32) -> (i32, i32, i32) {
    %c0_i32 = arith.constant 0 : i32
    %c0_i32_0 = arith.constant 0 : i32
    %c0_i32_1 = arith.constant 0 : i32
    return %arg1, %c0_i32, %c0_i32_0 : i32, i32, i32
  }
  func.func @transform_15(%arg0: i32, %arg1: i32) -> (i32, i32, i32) {
    %c0_i32 = arith.constant 0 : i32
    %c0_i32_0 = arith.constant 0 : i32
    %c0_i32_1 = arith.constant 0 : i32
    return %arg1, %c0_i32, %c0_i32_0 : i32, i32, i32
  }
  func.func @transform_16(%arg0: i32, %arg1: i32) -> (i32, i32, i32) {
    %c0_i32 = arith.constant 0 : i32
    %c0_i32_0 = arith.constant 0 : i32
    %c0_i32_1 = arith.constant 0 : i32
    return %arg0, %c0_i32, %c0_i32_0 : i32, i32, i32
  }
}

</mosaic_0001>

<llo_original>
// kernel: graph_transformer_encoder.1
$region0: #{graph_transformer_encoder.1}
  #allocation0 [shape = 'u32[]', space=smem, size = 0x4, offset = 0x4, fixed_abs, tag = 'smem constant byte address 0x4 - core index']
  #allocation1 [shape = 'u32[144,128]{1,0:T(1,128)}', space=vmem, size = 0x12000, scoped, tag = 'internal scratch']
  %s0 = inlined_call_operand.vmem [shape: f32[2,8,32], index: 0, kind: input, shape index: {}]
  %s1 = inlined_call_operand.vmem [shape: f32[2,8,32], index: 1, kind: input, shape index: {}]
  %s2 = inlined_call_operand.vmem [shape: bf16[2,32,64], index: 2, kind: input, shape index: {}]
  %s3 = inlined_call_operand.vmem [shape: f32[2,1,64], index: 3, kind: input, shape index: {}]
  %s4 = inlined_call_operand.vmem [shape: bf16[2,32,32], index: 4, kind: input, shape index: {}]
  %s5 = inlined_call_operand.vmem [shape: f32[2,1,32], index: 5, kind: input, shape index: {}]
  %s6 = inlined_call_operand.vmem [shape: bf16[2,32,32], index: 6, kind: input, shape index: {}]
  %s7 = inlined_call_operand.vmem [shape: f32[2,1,32], index: 7, kind: input, shape index: {}]
  %s8 = inlined_call_operand.vmem [shape: f32[2,1,32], index: 8, kind: input, shape index: {}]
  %s9 = inlined_call_operand.vmem [shape: f32[2,1,32], index: 9, kind: input, shape index: {}]
  %s10 = inlined_call_operand.vmem [shape: bf16[2,32,64], index: 10, kind: input, shape index: {}]
  %s11 = inlined_call_operand.hbm [shape: f32[2,1,64], index: 11, kind: input, shape index: {}]
  %s12 = inlined_call_operand.vmem [shape: bf16[2,64,32], index: 12, kind: input, shape index: {}]
  %s13 = inlined_call_operand.hbm [shape: f32[2,1,32], index: 13, kind: input, shape index: {}]
  %s14 = inlined_call_operand.vmem [shape: f32[2,1,32], index: 14, kind: input, shape index: {}]
  %s15 = inlined_call_operand.vmem [shape: f32[2,1,32], index: 15, kind: input, shape index: {}]
  %s16 = inlined_call_operand.vmem [shape: f32[2,8,32], index: 16, kind: output, shape index: {}]
  %s17 = sld [smem:[#allocation0]]
  $region109: #{graph_transformer_encoder.1} parent=0
    _
  %s19 = ssub.s32 1, %s17
  %s20 = scalar_select 0, %s19, %s17
  $region1: #{graph_transformer_encoder.1} parent=0
    #allocation2 [shape = 'u8[1024]{0}', space=vmem, size = 0x400, scoped, tag = 'input window, operand 11']
    #allocation3 [shape = 's32[2]{0}', space=sflag, size = 0x8, scoped, tag = 'scoped memory for graph_transformer_encoder.1']
    #allocation4 [shape = 'u8[1024]{0}', space=vmem, size = 0x400, scoped, tag = 'input window, operand 13']
    #allocation5 [shape = 's32[2]{0}', space=sflag, size = 0x8, scoped, tag = 'scoped memory for graph_transformer_encoder.1']
    %21 = vsyncpa [#allocation3], 0
    %s22 = scalar_lea.sflag [#allocation3], 1
    %23 = vsyncpa %s22, 0
    %24 = vsyncpa [#allocation5], 0
    %s25 = scalar_lea.sflag [#allocation5], 1
    %26 = vsyncpa %s25, 0
    loop: start=0, step=1, limit=4
    $region2: #{graph_transformer_encoder.1} parent=1 // loop_pre_header
      _
    $region3: #{graph_transformer_encoder.1} parent=1 // loop_header
      %s28 = sphi 0, %s32
      %p29 = scmp.ge.s32.totalorder %s28, 4
      %s35 = sphi 0, %s47
      %s36 = sphi 0, %s43
      %s37 = sphi 0, %s35
      %s38 = sphi 0, %s36
      %s39 = sphi 0, %s37
      %s40 = sphi 0, %s38
      %s50 = sphi 0, %s52
      %s53 = sphi 0, %s50
      %s54 = sphi 0, %s53
      %s70 = sphi 0, %s54
      %s76 = sphi 0, %s78
      %s79 = sphi 0, %s76
      %s80 = sphi 0, %s79
      %s96 = sphi 0, %s80
      %s102 = sphi 0, %s104
      %s105 = sphi 0, %s102
      %s106 = sphi 0, %s105
      %s122 = sphi 0, %s106
      %s128 = sphi 0, %s130
      %s131 = sphi 0, %s128
      %s132 = sphi 0, %s131
      %s148 = sphi 0, %s132
      %s154 = sphi 0, %s156
      %s157 = sphi 0, %s154
      %s158 = sphi 0, %s157
      %s174 = sphi 0, %s158
      %s180 = sphi 0, %s182
      %s183 = sphi 0, %s180
      %s184 = sphi 0, %s183
      %s200 = sphi 0, %s184
      %s206 = sphi 0, %s208
      %s209 = sphi 0, %s206
      %s210 = sphi 0, %s209
      %s226 = sphi 0, %s210
      %s232 = sphi 0, %s234
      %s235 = sphi 0, %s232
      %s236 = sphi 0, %s235
      %s252 = sphi 0, %s236
      %s258 = sphi 0, %s260
      %s261 = sphi 0, %s258
      %s262 = sphi 0, %s261
      %s278 = sphi 0, %s262
      %s284 = sphi 0, %s286
      %s287 = sphi 0, %s284
      %s288 = sphi 0, %s287
      %s304 = sphi 0, %s288
      %s310 = sphi 0, %s312
      %s313 = sphi 0, %s310
      %s314 = sphi 0, %s313
      %s330 = sphi 0, %s314
      %s336 = sphi 0, %s338
      %s339 = sphi 0, %s336
      %s340 = sphi 0, %s339
      %s356 = sphi 0, %s340
      %s362 = sphi 0, %s364
      %s365 = sphi 0, %s362
      %s366 = sphi 0, %s365
      %s382 = sphi 0, %s366
      %s388 = sphi 0, %s390
      %s391 = sphi 0, %s388
      %s392 = sphi 0, %s391
      %s408 = sphi 0, %s392
      %s414 = sphi 0, %s416
      %s417 = sphi 0, %s414
      %s418 = sphi 0, %s417
      %s434 = sphi 0, %s418
      %s440 = sphi 0, %s442
      %s443 = sphi 0, %s440
      %s444 = sphi 0, %s443
      %s460 = sphi 0, %s444
      %s466 = sphi 0, %s468
      %s469 = sphi 0, %s466
      %s470 = sphi 0, %s469
      %s486 = sphi 0, %s470
    $region4: #{graph_transformer_encoder.1} parent=1 // loop_header_branch
      %31 = sbr.rel (%p29) target = $region8
    $region5: #{graph_transformer_encoder.1} parent=1 // loop_body
      %s33 = ssub.s32 %s28, 1
      %s34 = ssub.s32 %s28, 2
      %s41 = sadd.s32 1, %s36
      %p42 = scmp.ge.s32.totalorder %s41, 2
      %s43 = scalar_select %p42, 0, %s41
      %s44 = sadd.s32 1, %s35
      %s45 = scalar_select %p42, %s44, %s35
      %p46 = scmp.ge.s32.totalorder %s45, 1
      %s47 = scalar_select %p46, 0, %s45
      %s48 = ssub.s32 %s35, %s47
      %p49 = scmp.eq.s32.totalorder %s48, 0
      %s51 = sadd.s32 %s50, 1
      %s52 = scalar_select %p49, %s50, %s51
      %p55 = pneg %p49
      %p56 = scmp.eq.s32.totalorder %s28, 1
      %p57 = por %p55, %p56
      %p58 = scmp.ne.s32.totalorder %s50, %s53
      %p59 = scmp.eq.s32.totalorder %s28, 0
      %p60 = por %p58, %p59
      %p61 = scmp.ne.s32.totalorder %s50, %s53
      %p62 = scmp.eq.s32.totalorder %s33, 1
      %p63 = por %p61, %p62
      %p64 = scmp.ne.s32.totalorder %s53, %s54
      %p65 = scmp.eq.s32.totalorder %s33, 0
      %p66 = por %p64, %p65
      %p67 = scmp.ne.s32.totalorder %s53, %s54
      %p68 = scmp.eq.s32.totalorder %s34, 1
      %p69 = por %p67, %p68
      %p71 = scmp.ne.s32.totalorder %s54, %s70
      %p72 = scmp.eq.s32.totalorder %s34, 0
      %p73 = por %p71, %p72
      %s74 = ssub.s32 %s35, %s47
      %p75 = scmp.eq.s32.totalorder %s74, 0
      %s77 = sadd.s32 %s76, 1
      %s78 = scalar_select %p75, %s76, %s77
      %p81 = pneg %p75
      %p82 = scmp.eq.s32.totalorder %s28, 1
      %p83 = por %p81, %p82
      %p84 = scmp.ne.s32.totalorder %s76, %s79
      %p85 = scmp.eq.s32.totalorder %s28, 0
      %p86 = por %p84, %p85
      %p87 = scmp.ne.s32.totalorder %s76, %s79
      %p88 = scmp.eq.s32.totalorder %s33, 1
      %p89 = por %p87, %p88
      %p90 = scmp.ne.s32.totalorder %s79, %s80
      %p91 = scmp.eq.s32.totalorder %s33, 0
      %p92 = por %p90, %p91
      %p93 = scmp.ne.s32.totalorder %s79, %s80
      %p94 = scmp.eq.s32.totalorder %s34, 1
      %p95 = por %p93, %p94
      %p97 = scmp.ne.s32.totalorder %s80, %s96
      %p98 = scmp.eq.s32.totalorder %s34, 0
      %p99 = por %p97, %p98
      %s100 = ssub.s32 %s36, %s43
      %p101 = scmp.eq.s32.totalorder %s100, 0
      %s103 = sadd.s32 %s102, 1
      %s104 = scalar_select %p101, %s102, %s103
      %p107 = pneg %p101
      %p108 = scmp.eq.s32.totalorder %s28, 1
      %p109 = por %p107, %p108
      %p110 = scmp.ne.s32.totalorder %s102, %s105
      %p111 = scmp.eq.s32.totalorder %s28, 0
      %p112 = por %p110, %p111
      %p113 = scmp.ne.s32.totalorder %s102, %s105
      %p114 = scmp.eq.s32.totalorder %s33, 1
      %p115 = por %p113, %p114
      %p116 = scmp.ne.s32.totalorder %s105, %s106
      %p117 = scmp.eq.s32.totalorder %s33, 0
      %p118 = por %p116, %p117
      %p119 = scmp.ne.s32.totalorder %s105, %s106
      %p120 = scmp.eq.s32.totalorder %s34, 1
      %p121 = por %p119, %p120
      %p123 = scmp.ne.s32.totalorder %s106, %s122
      %p124 = scmp.eq.s32.totalorder %s34, 0
      %p125 = por %p123, %p124
      %s126 = ssub.s32 %s36, %s43
      %p127 = scmp.eq.s32.totalorder %s126, 0
      %s129 = sadd.s32 %s128, 1
      %s130 = scalar_select %p127, %s128, %s129
      %p133 = pneg %p127
      %p134 = scmp.eq.s32.totalorder %s28, 1
      %p135 = por %p133, %p134
      %p136 = scmp.ne.s32.totalorder %s128, %s131
      %p137 = scmp.eq.s32.totalorder %s28, 0
      %p138 = por %p136, %p137
      %p139 = scmp.ne.s32.totalorder %s128, %s131
      %p140 = scmp.eq.s32.totalorder %s33, 1
      %p141 = por %p139, %p140
      %p142 = scmp.ne.s32.totalorder %s131, %s132
      %p143 = scmp.eq.s32.totalorder %s33, 0
      %p144 = por %p142, %p143
      %p145 = scmp.ne.s32.totalorder %s131, %s132
      %p146 = scmp.eq.s32.totalorder %s34, 1
      %p147 = por %p145, %p146
      %p149 = scmp.ne.s32.totalorder %s132, %s148
      %p150 = scmp.eq.s32.totalorder %s34, 0
      %p151 = por %p149, %p150
      %s152 = ssub.s32 %s36, %s43
      %p153 = scmp.eq.s32.totalorder %s152, 0
      %s155 = sadd.s32 %s154, 1
      %s156 = scalar_select %p153, %s154, %s155
      %p159 = pneg %p153
      %p160 = scmp.eq.s32.totalorder %s28, 1
      %p161 = por %p159, %p160
      %p162 = scmp.ne.s32.totalorder %s154, %s157
      %p163 = scmp.eq.s32.totalorder %s28, 0
      %p164 = por %p162, %p163
      %p165 = scmp.ne.s32.totalorder %s154, %s157
      %p166 = scmp.eq.s32.totalorder %s33, 1
      %p167 = por %p165, %p166
      %p168 = scmp.ne.s32.totalorder %s157, %s158
      %p169 = scmp.eq.s32.totalorder %s33, 0
      %p170 = por %p168, %p169
      %p171 = scmp.ne.s32.totalorder %s157, %s158
      %p172 = scmp.eq.s32.totalorder %s34, 1
      %p173 = por %p171, %p172
      %p175 = scmp.ne.s32.totalorder %s158, %s174
      %p176 = scmp.eq.s32.totalorder %s34, 0
      %p177 = por %p175, %p176
      %s178 = ssub.s32 %s36, %s43
      %p179 = scmp.eq.s32.totalorder %s178, 0
      %s181 = sadd.s32 %s180, 1
      %s182 = scalar_select %p179, %s180, %s181
      %p185 = pneg %p179
      %p186 = scmp.eq.s32.totalorder %s28, 1
      %p187 = por %p185, %p186
      %p188 = scmp.ne.s32.totalorder %s180, %s183
      %p189 = scmp.eq.s32.totalorder %s28, 0
      %p190 = por %p188, %p189
      %p191 = scmp.ne.s32.totalorder %s180, %s183
      %p192 = scmp.eq.s32.totalorder %s33, 1
      %p193 = por %p191, %p192
      %p194 = scmp.ne.s32.totalorder %s183, %s184
      %p195 = scmp.eq.s32.totalorder %s33, 0
      %p196 = por %p194, %p195
      %p197 = scmp.ne.s32.totalorder %s183, %s184
      %p198 = scmp.eq.s32.totalorder %s34, 1
      %p199 = por %p197, %p198
      %p201 = scmp.ne.s32.totalorder %s184, %s200
      %p202 = scmp.eq.s32.totalorder %s34, 0
      %p203 = por %p201, %p202
      %s204 = ssub.s32 %s36, %s43
      %p205 = scmp.eq.s32.totalorder %s204, 0
      %s207 = sadd.s32 %s206, 1
      %s208 = scalar_select %p205, %s206, %s207
      %p211 = pneg %p205
      %p212 = scmp.eq.s32.totalorder %s28, 1
      %p213 = por %p211, %p212
      %p214 = scmp.ne.s32.totalorder %s206, %s209
      %p215 = scmp.eq.s32.totalorder %s28, 0
      %p216 = por %p214, %p215
      %p217 = scmp.ne.s32.totalorder %s206, %s209
      %p218 = scmp.eq.s32.totalorder %s33, 1
      %p219 = por %p217, %p218
      %p220 = scmp.ne.s32.totalorder %s209, %s210
      %p221 = scmp.eq.s32.totalorder %s33, 0
      %p222 = por %p220, %p221
      %p223 = scmp.ne.s32.totalorder %s209, %s210
      %p224 = scmp.eq.s32.totalorder %s34, 1
      %p225 = por %p223, %p224
      %p227 = scmp.ne.s32.totalorder %s210, %s226
      %p228 = scmp.eq.s32.totalorder %s34, 0
      %p229 = por %p227, %p228
      %s230 = ssub.s32 %s36, %s43
      %p231 = scmp.eq.s32.totalorder %s230, 0
      %s233 = sadd.s32 %s232, 1
      %s234 = scalar_select %p231, %s232, %s233
      %p237 = pneg %p231
      %p238 = scmp.eq.s32.totalorder %s28, 1
      %p239 = por %p237, %p238
      %p240 = scmp.ne.s32.totalorder %s232, %s235
      %p241 = scmp.eq.s32.totalorder %s28, 0
      %p242 = por %p240, %p241
      %p243 = scmp.ne.s32.totalorder %s232, %s235
      %p244 = scmp.eq.s32.totalorder %s33, 1
      %p245 = por %p243, %p244
      %p246 = scmp.ne.s32.totalorder %s235, %s236
      %p247 = scmp.eq.s32.totalorder %s33, 0
      %p248 = por %p246, %p247
      %p249 = scmp.ne.s32.totalorder %s235, %s236
      %p250 = scmp.eq.s32.totalorder %s34, 1
      %p251 = por %p249, %p250
      %p253 = scmp.ne.s32.totalorder %s236, %s252
      %p254 = scmp.eq.s32.totalorder %s34, 0
      %p255 = por %p253, %p254
      %s256 = ssub.s32 %s36, %s43
      %p257 = scmp.eq.s32.totalorder %s256, 0
      %s259 = sadd.s32 %s258, 1
      %s260 = scalar_select %p257, %s258, %s259
      %p263 = pneg %p257
      %p264 = scmp.eq.s32.totalorder %s28, 1
      %p265 = por %p263, %p264
      %p266 = scmp.ne.s32.totalorder %s258, %s261
      %p267 = scmp.eq.s32.totalorder %s28, 0
      %p268 = por %p266, %p267
      %p269 = scmp.ne.s32.totalorder %s258, %s261
      %p270 = scmp.eq.s32.totalorder %s33, 1
      %p271 = por %p269, %p270
      %p272 = scmp.ne.s32.totalorder %s261, %s262
      %p273 = scmp.eq.s32.totalorder %s33, 0
      %p274 = por %p272, %p273
      %p275 = scmp.ne.s32.totalorder %s261, %s262
      %p276 = scmp.eq.s32.totalorder %s34, 1
      %p277 = por %p275, %p276
      %p279 = scmp.ne.s32.totalorder %s262, %s278
      %p280 = scmp.eq.s32.totalorder %s34, 0
      %p281 = por %p279, %p280
      %s282 = ssub.s32 %s36, %s43
      %p283 = scmp.eq.s32.totalorder %s282, 0
      %s285 = sadd.s32 %s284, 1
      %s286 = scalar_select %p283, %s284, %s285
      %p289 = pneg %p283
      %p290 = scmp.eq.s32.totalorder %s28, 1
      %p291 = por %p289, %p290
      %p292 = scmp.ne.s32.totalorder %s284, %s287
      %p293 = scmp.eq.s32.totalorder %s28, 0
      %p294 = por %p292, %p293
      %p295 = scmp.ne.s32.totalorder %s284, %s287
      %p296 = scmp.eq.s32.totalorder %s33, 1
      %p297 = por %p295, %p296
      %p298 = scmp.ne.s32.totalorder %s287, %s288
      %p299 = scmp.eq.s32.totalorder %s33, 0
      %p300 = por %p298, %p299
      %p301 = scmp.ne.s32.totalorder %s287, %s288
      %p302 = scmp.eq.s32.totalorder %s34, 1
      %p303 = por %p301, %p302
      %p305 = scmp.ne.s32.totalorder %s288, %s304
      %p306 = scmp.eq.s32.totalorder %s34, 0
      %p307 = por %p305, %p306
      %s308 = ssub.s32 %s36, %s43
      %p309 = scmp.eq.s32.totalorder %s308, 0
      %s311 = sadd.s32 %s310, 1
      %s312 = scalar_select %p309, %s310, %s311
      %p315 = pneg %p309
      %p316 = scmp.eq.s32.totalorder %s28, 1
      %p317 = por %p315, %p316
      %p318 = scmp.ne.s32.totalorder %s310, %s313
      %p319 = scmp.eq.s32.totalorder %s28, 0
      %p320 = por %p318, %p319
      %p321 = scmp.ne.s32.totalorder %s310, %s313
      %p322 = scmp.eq.s32.totalorder %s33, 1
      %p323 = por %p321, %p322
      %p324 = scmp.ne.s32.totalorder %s313, %s314
      %p325 = scmp.eq.s32.totalorder %s33, 0
      %p326 = por %p324, %p325
      %p327 = scmp.ne.s32.totalorder %s313, %s314
      %p328 = scmp.eq.s32.totalorder %s34, 1
      %p329 = por %p327, %p328
      %p331 = scmp.ne.s32.totalorder %s314, %s330
      %p332 = scmp.eq.s32.totalorder %s34, 0
      %p333 = por %p331, %p332
      %s334 = ssub.s32 %s36, %s43
      %p335 = scmp.eq.s32.totalorder %s334, 0
      %s337 = sadd.s32 %s336, 1
      %s338 = scalar_select %p335, %s336, %s337
      %p341 = pneg %p335
      %p342 = scmp.eq.s32.totalorder %s28, 1
      %p343 = por %p341, %p342
      %p344 = scmp.ne.s32.totalorder %s336, %s339
      %p345 = scmp.eq.s32.totalorder %s28, 0
      %p346 = por %p344, %p345
      %p347 = scmp.ne.s32.totalorder %s336, %s339
      %p348 = scmp.eq.s32.totalorder %s33, 1
      %p349 = por %p347, %p348
      %p350 = scmp.ne.s32.totalorder %s339, %s340
      %p351 = scmp.eq.s32.totalorder %s33, 0
      %p352 = por %p350, %p351
      %p353 = scmp.ne.s32.totalorder %s339, %s340
      %p354 = scmp.eq.s32.totalorder %s34, 1
      %p355 = por %p353, %p354
      %p357 = scmp.ne.s32.totalorder %s340, %s356
      %p358 = scmp.eq.s32.totalorder %s34, 0
      %p359 = por %p357, %p358
      %s360 = ssub.s32 %s36, %s43
      %p361 = scmp.eq.s32.totalorder %s360, 0
      %s363 = sadd.s32 %s362, 1
      %s364 = scalar_select %p361, %s362, %s363
      %p367 = pneg %p361
      %p368 = scmp.eq.s32.totalorder %s28, 1
      %p369 = por %p367, %p368
      %p370 = scmp.ne.s32.totalorder %s362, %s365
      %p371 = scmp.eq.s32.totalorder %s28, 0
      %p372 = por %p370, %p371
      %p373 = scmp.ne.s32.totalorder %s362, %s365
      %p374 = scmp.eq.s32.totalorder %s33, 1
      %p375 = por %p373, %p374
      %p376 = scmp.ne.s32.totalorder %s365, %s366
      %p377 = scmp.eq.s32.totalorder %s33, 0
      %p378 = por %p376, %p377
      %p379 = scmp.ne.s32.totalorder %s365, %s366
      %p380 = scmp.eq.s32.totalorder %s34, 1
      %p381 = por %p379, %p380
      %p383 = scmp.ne.s32.totalorder %s366, %s382
      %p384 = scmp.eq.s32.totalorder %s34, 0
      %p385 = por %p383, %p384
      %s386 = ssub.s32 %s36, %s43
      %p387 = scmp.eq.s32.totalorder %s386, 0
      %s389 = sadd.s32 %s388, 1
      %s390 = scalar_select %p387, %s388, %s389
      %p393 = pneg %p387
      %p394 = scmp.eq.s32.totalorder %s28, 1
      %p395 = por %p393, %p394
      %p396 = scmp.ne.s32.totalorder %s388, %s391
      %p397 = scmp.eq.s32.totalorder %s28, 0
      %p398 = por %p396, %p397
      %p399 = scmp.ne.s32.totalorder %s388, %s391
      %p400 = scmp.eq.s32.totalorder %s33, 1
      %p401 = por %p399, %p400
      %p402 = scmp.ne.s32.totalorder %s391, %s392
      %p403 = scmp.eq.s32.totalorder %s33, 0
      %p404 = por %p402, %p403
      %p405 = scmp.ne.s32.totalorder %s391, %s392
      %p406 = scmp.eq.s32.totalorder %s34, 1
      %p407 = por %p405, %p406
      %p409 = scmp.ne.s32.totalorder %s392, %s408
      %p410 = scmp.eq.s32.totalorder %s34, 0
      %p411 = por %p409, %p410
      %s412 = ssub.s32 %s36, %s43
      %p413 = scmp.eq.s32.totalorder %s412, 0
      %s415 = sadd.s32 %s414, 1
      %s416 = scalar_select %p413, %s414, %s415
      %p419 = pneg %p413
      %p420 = scmp.eq.s32.totalorder %s28, 1
      %p421 = por %p419, %p420
      %p422 = scmp.ne.s32.totalorder %s414, %s417
      %p423 = scmp.eq.s32.totalorder %s28, 0
      %p424 = por %p422, %p423
      %p425 = scmp.ne.s32.totalorder %s414, %s417
      %p426 = scmp.eq.s32.totalorder %s33, 1
      %p427 = por %p425, %p426
      %p428 = scmp.ne.s32.totalorder %s417, %s418
      %p429 = scmp.eq.s32.totalorder %s33, 0
      %p430 = por %p428, %p429
      %p431 = scmp.ne.s32.totalorder %s417, %s418
      %p432 = scmp.eq.s32.totalorder %s34, 1
      %p433 = por %p431, %p432
      %p435 = scmp.ne.s32.totalorder %s418, %s434
      %p436 = scmp.eq.s32.totalorder %s34, 0
      %p437 = por %p435, %p436
      %s438 = ssub.s32 %s36, %s43
      %p439 = scmp.eq.s32.totalorder %s438, 0
      %s441 = sadd.s32 %s440, 1
      %s442 = scalar_select %p439, %s440, %s441
      %p445 = pneg %p439
      %p446 = scmp.eq.s32.totalorder %s28, 1
      %p447 = por %p445, %p446
      %p448 = scmp.ne.s32.totalorder %s440, %s443
      %p449 = scmp.eq.s32.totalorder %s28, 0
      %p450 = por %p448, %p449
      %p451 = scmp.ne.s32.totalorder %s440, %s443
      %p452 = scmp.eq.s32.totalorder %s33, 1
      %p453 = por %p451, %p452
      %p454 = scmp.ne.s32.totalorder %s443, %s444
      %p455 = scmp.eq.s32.totalorder %s33, 0
      %p456 = por %p454, %p455
      %p457 = scmp.ne.s32.totalorder %s443, %s444
      %p458 = scmp.eq.s32.totalorder %s34, 1
      %p459 = por %p457, %p458
      %p461 = scmp.ne.s32.totalorder %s444, %s460
      %p462 = scmp.eq.s32.totalorder %s34, 0
      %p463 = por %p461, %p462
      %s464 = ssub.s32 %s35, %s47
      %p465 = scmp.eq.s32.totalorder %s464, 0
      %s467 = sadd.s32 %s466, 1
      %s468 = scalar_select %p465, %s466, %s467
      %p471 = pneg %p465
      %p472 = scmp.eq.s32.totalorder %s28, 1
      %p473 = por %p471, %p472
      %p474 = scmp.ne.s32.totalorder %s466, %s469
      %p475 = scmp.eq.s32.totalorder %s28, 0
      %p476 = por %p474, %p475
      %p477 = scmp.ne.s32.totalorder %s466, %s469
      %p478 = scmp.eq.s32.totalorder %s33, 1
      %p479 = por %p477, %p478
      %p480 = scmp.ne.s32.totalorder %s469, %s470
      %p481 = scmp.eq.s32.totalorder %s33, 0
      %p482 = por %p480, %p481
      %p483 = scmp.ne.s32.totalorder %s469, %s470
      %p484 = scmp.eq.s32.totalorder %s34, 1
      %p485 = por %p483, %p484
      %p487 = scmp.ne.s32.totalorder %s470, %s486
      %p488 = scmp.eq.s32.totalorder %s34, 0
      %p489 = por %p487, %p488
      %p490 = scmp.le.s32.totalorder 1, %s28
      %p491 = scmp.lt.s32.totalorder %s28, 3
      %p492 = pnand %p490, %p491
      %p493 = pneg %p492
      // Predicated region
      $region9: #{graph_transformer_encoder.1} parent=5 // pred_check
        _
      $region10: #{graph_transformer_encoder.1} parent=5 // pred_check_branch
        %495 = sbr.rel (%p492) target = $region12
      $region11: #{graph_transformer_encoder.1} parent=5 // pred_region
        %s496 = ssub.s32 %s28, 1
        // Predicated region
        $region13: #{graph_transformer_encoder.1} parent=11 // pred_check
          %p497 = pneg %p66
        $region14: #{graph_transformer_encoder.1} parent=11 // pred_check_branch
          %499 = sbr.rel (%p497) target = $region16
        $region15: #{graph_transformer_encoder.1} parent=11 // pred_region
          %s500 = smul.u32 2, %s37
          %p501 = scmp.lt.s32.totalorder %s500, 1
          %s502 = scalar_select %p501, %s500, 1
          %s503 = smul.addr %s502, 8
          %s504 = scalar_lea.vmem %s0, %s503
          %s505 = smul.u32 2, %s37
        $region16: #{graph_transformer_encoder.1} parent=11 // pred_fallthru
          _
        // Predicated region
        $region17: #{graph_transformer_encoder.1} parent=11 // pred_check
          %p506 = pneg %p92
        $region18: #{graph_transformer_encoder.1} parent=11 // pred_check_branch
          %508 = sbr.rel (%p506) target = $region20
        $region19: #{graph_transformer_encoder.1} parent=11 // pred_region
          %s509 = smul.u32 2, %s37
          %p510 = scmp.lt.s32.totalorder %s509, 1
          %s511 = scalar_select %p510, %s509, 1
          %s512 = smul.addr %s511, 8
          %s513 = scalar_lea.vmem %s1, %s512
          %s514 = smul.u32 2, %s37
        $region20: #{graph_transformer_encoder.1} parent=11 // pred_fallthru
          _
      $region12: #{graph_transformer_encoder.1} parent=5 // pred_fallthru
        _
      %p515 = scmp.lt.s32.totalorder %s28, 2
      // Predicated region
      $region21: #{graph_transformer_encoder.1} parent=5 // pred_check
        %p516 = pneg %p515
      $region22: #{graph_transformer_encoder.1} parent=5 // pred_check_branch
        %518 = sbr.rel (%p516) target = $region24
      $region23: #{graph_transformer_encoder.1} parent=5 // pred_region
        // Predicated region
        $region25: #{graph_transformer_encoder.1} parent=23 // pred_check
          %p519 = pneg %p112
        $region26: #{graph_transformer_encoder.1} parent=23 // pred_check_branch
          %521 = sbr.rel (%p519) target = $region28
        $region27: #{graph_transformer_encoder.1} parent=23 // pred_region
          %p522 = scmp.lt.s32.totalorder %s36, 1
          %s523 = scalar_select %p522, %s36, 1
          %s524 = smul.addr %s523, 4
          %s525 = smul.addr %s524, 4
          %s526 = scalar_lea.vmem %s2, %s525
        $region28: #{graph_transformer_encoder.1} parent=23 // pred_fallthru
          _
        // Predicated region
        $region29: #{graph_transformer_encoder.1} parent=23 // pred_check
          %p527 = pneg %p138
        $region30: #{graph_transformer_encoder.1} parent=23 // pred_check_branch
          %529 = sbr.rel (%p527) target = $region32
        $region31: #{graph_transformer_encoder.1} parent=23 // pred_region
          %p530 = scmp.lt.s32.totalorder %s36, 1
          %s531 = scalar_select %p530, %s36, 1
          %s532 = scalar_lea.vmem %s3, %s531
        $region32: #{graph_transformer_encoder.1} parent=23 // pred_fallthru
          _
        // Predicated region
        $region33: #{graph_transformer_encoder.1} parent=23 // pred_check
          %p533 = pneg %p164
        $region34: #{graph_transformer_encoder.1} parent=23 // pred_check_branch
          %535 = sbr.rel (%p533) target = $region36
        $region35: #{graph_transformer_encoder.1} parent=23 // pred_region
          %p536 = scmp.lt.s32.totalorder %s36, 1
          %s537 = scalar_select %p536, %s36, 1
          %s538 = smul.addr %s537, 4
          %s539 = smul.addr %s538, 4
          %s540 = scalar_lea.vmem %s4, %s539
        $region36: #{graph_transformer_encoder.1} parent=23 // pred_fallthru
          _
        // Predicated region
        $region37: #{graph_transformer_encoder.1} parent=23 // pred_check
          %p541 = pneg %p190
        $region38: #{graph_transformer_encoder.1} parent=23 // pred_check_branch
          %543 = sbr.rel (%p541) target = $region40
        $region39: #{graph_transformer_encoder.1} parent=23 // pred_region
          %p544 = scmp.lt.s32.totalorder %s36, 1
          %s545 = scalar_select %p544, %s36, 1
          %s546 = scalar_lea.vmem %s5, %s545
        $region40: #{graph_transformer_encoder.1} parent=23 // pred_fallthru
          _
        // Predicated region
        $region41: #{graph_transformer_encoder.1} parent=23 // pred_check
          %p547 = pneg %p216
        $region42: #{graph_transformer_encoder.1} parent=23 // pred_check_branch
          %549 = sbr.rel (%p547) target = $region44
        $region43: #{graph_transformer_encoder.1} parent=23 // pred_region
          %p550 = scmp.lt.s32.totalorder %s36, 1
          %s551 = scalar_select %p550, %s36, 1
          %s552 = smul.addr %s551, 4
          %s553 = smul.addr %s552, 4
          %s554 = scalar_lea.vmem %s6, %s553
        $region44: #{graph_transformer_encoder.1} parent=23 // pred_fallthru
          _
        // Predicated region
        $region45: #{graph_transformer_encoder.1} parent=23 // pred_check
          %p555 = pneg %p242
        $region46: #{graph_transformer_encoder.1} parent=23 // pred_check_branch
          %557 = sbr.rel (%p555) target = $region48
        $region47: #{graph_transformer_encoder.1} parent=23 // pred_region
          %p558 = scmp.lt.s32.totalorder %s36, 1
          %s559 = scalar_select %p558, %s36, 1
          %s560 = scalar_lea.vmem %s7, %s559
        $region48: #{graph_transformer_encoder.1} parent=23 // pred_fallthru
          _
        // Predicated region
        $region49: #{graph_transformer_encoder.1} parent=23 // pred_check
          %p561 = pneg %p268
        $region50: #{graph_transformer_encoder.1} parent=23 // pred_check_branch
          %563 = sbr.rel (%p561) target = $region52
        $region51: #{graph_transformer_encoder.1} parent=23 // pred_region
          %p564 = scmp.lt.s32.totalorder %s36, 1
          %s565 = scalar_select %p564, %s36, 1
          %s566 = scalar_lea.vmem %s8, %s565
        $region52: #{graph_transformer_encoder.1} parent=23 // pred_fallthru
          _
        // Predicated region
        $region53: #{graph_transformer_encoder.1} parent=23 // pred_check
          %p567 = pneg %p294
        $region54: #{graph_transformer_encoder.1} parent=23 // pred_check_branch
          %569 = sbr.rel (%p567) target = $region56
        $region55: #{graph_transformer_encoder.1} parent=23 // pred_region
          %p570 = scmp.lt.s32.totalorder %s36, 1
          %s571 = scalar_select %p570, %s36, 1
          %s572 = scalar_lea.vmem %s9, %s571
        $region56: #{graph_transformer_encoder.1} parent=23 // pred_fallthru
          _
        // Predicated region
        $region57: #{graph_transformer_encoder.1} parent=23 // pred_check
          %p573 = pneg %p320
        $region58: #{graph_transformer_encoder.1} parent=23 // pred_check_branch
          %575 = sbr.rel (%p573) target = $region60
        $region59: #{graph_transformer_encoder.1} parent=23 // pred_region
          %p576 = scmp.lt.s32.totalorder %s36, 1
          %s577 = scalar_select %p576, %s36, 1
          %s578 = smul.addr %s577, 4
          %s579 = smul.addr %s578, 4
          %s580 = scalar_lea.vmem %s10, %s579
        $region60: #{graph_transformer_encoder.1} parent=23 // pred_fallthru
          _
        // Predicated region
        $region61: #{graph_transformer_encoder.1} parent=23 // pred_check
          %p581 = pneg %p346
        $region62: #{graph_transformer_encoder.1} parent=23 // pred_check_branch
          %583 = sbr.rel (%p581) target = $region64
        $region63: #{graph_transformer_encoder.1} parent=23 // pred_region
          %s584 = sand.u32 %s336, 1
          %s585 = scalar_lea.sflag [#allocation3], %s584
          %s586 = sand.u32 %s336, 1
          %s587 = scalar_lea.vmem [#allocation2], %s586
          %s589 = ssub.s32 16, 16
          %590 = vsyncadd %s585, %s589
          %s591 = smul.addr %s36, 16
          %s592 = scalar_lea.hbm %s11, %s591
          %s594 = sshll.u32 %s587, 4
          %s595 = int_to_ptr.vmem [resolvable:$true] %s594
          %597 = dma.hbm_to_vmem [thread:$0]  %s592, 16, %s595, %s585
        $region64: #{graph_transformer_encoder.1} parent=23 // pred_fallthru
          _
        // Predicated region
        $region65: #{graph_transformer_encoder.1} parent=23 // pred_check
          %p598 = pneg %p372
        $region66: #{graph_transformer_encoder.1} parent=23 // pred_check_branch
          %600 = sbr.rel (%p598) target = $region68
        $region67: #{graph_transformer_encoder.1} parent=23 // pred_region
          %p601 = scmp.lt.s32.totalorder %s36, 1
          %s602 = scalar_select %p601, %s36, 1
          %s603 = smul.addr %s602, 8
          %s604 = smul.addr %s603, 4
          %s605 = scalar_lea.vmem %s12, %s604
        $region68: #{graph_transformer_encoder.1} parent=23 // pred_fallthru
          _
        // Predicated region
        $region69: #{graph_transformer_encoder.1} parent=23 // pred_check
          %p606 = pneg %p398
        $region70: #{graph_transformer_encoder.1} parent=23 // pred_check_branch
          %608 = sbr.rel (%p606) target = $region72
        $region71: #{graph_transformer_encoder.1} parent=23 // pred_region
          %s609 = sand.u32 %s388, 1
          %s610 = scalar_lea.sflag [#allocation5], %s609
          %s611 = sand.u32 %s388, 1
          %s612 = scalar_lea.vmem [#allocation4], %s611
          %s614 = ssub.s32 16, 16
          %615 = vsyncadd %s610, %s614
          %s616 = smul.addr %s36, 16
          %s617 = scalar_lea.hbm %s13, %s616
          %s619 = sshll.u32 %s612, 4
          %s620 = int_to_ptr.vmem [resolvable:$true] %s619
          %622 = dma.hbm_to_vmem [thread:$0]  %s617, 16, %s620, %s610
        $region72: #{graph_transformer_encoder.1} parent=23 // pred_fallthru
          _
        // Predicated region
        $region73: #{graph_transformer_encoder.1} parent=23 // pred_check
          %p623 = pneg %p424
        $region74: #{graph_transformer_encoder.1} parent=23 // pred_check_branch
          %625 = sbr.rel (%p623) target = $region76
        $region75: #{graph_transformer_encoder.1} parent=23 // pred_region
          %p626 = scmp.lt.s32.totalorder %s36, 1
          %s627 = scalar_select %p626, %s36, 1
          %s628 = scalar_lea.vmem %s14, %s627
        $region76: #{graph_transformer_encoder.1} parent=23 // pred_fallthru
          _
        // Predicated region
        $region77: #{graph_transformer_encoder.1} parent=23 // pred_check
          %p629 = pneg %p450
        $region78: #{graph_transformer_encoder.1} parent=23 // pred_check_branch
          %631 = sbr.rel (%p629) target = $region80
        $region79: #{graph_transformer_encoder.1} parent=23 // pred_region
          %p632 = scmp.lt.s32.totalorder %s36, 1
          %s633 = scalar_select %p632, %s36, 1
          %s634 = scalar_lea.vmem %s15, %s633
        $region80: #{graph_transformer_encoder.1} parent=23 // pred_fallthru
          _
      $region24: #{graph_transformer_encoder.1} parent=5 // pred_fallthru
        _
      %p635 = scmp.le.s32.totalorder 1, %s28
      %p636 = scmp.lt.s32.totalorder %s28, 3
      %p637 = pnand %p635, %p636
      %p638 = pneg %p637
      // Predicated region
      $region81: #{graph_transformer_encoder.1} parent=5 // pred_check
        _
      $region82: #{graph_transformer_encoder.1} parent=5 // pred_check_branch
        %640 = sbr.rel (%p637) target = $region84
      $region83: #{graph_transformer_encoder.1} parent=5 // pred_region
        %s641 = ssub.s32 %s28, 1
        %s642 = sand.u32 %s339, 1
        %s643 = scalar_lea.sflag [#allocation3], %s642
        %s644 = sand.u32 %s339, 1
        %s645 = scalar_lea.vmem [#allocation2], %s644
        // Predicated region
        $region85: #{graph_transformer_encoder.1} parent=83 // pred_check
          %p646 = pneg %p352
        $region86: #{graph_transformer_encoder.1} parent=83 // pred_check_branch
          %648 = sbr.rel (%p646) target = $region88
        $region87: #{graph_transformer_encoder.1} parent=83 // pred_region
          %649 = dma.done %s643, 16
        $region88: #{graph_transformer_encoder.1} parent=83 // pred_fallthru
          _
        %s650 = sand.u32 %s391, 1
        %s651 = scalar_lea.sflag [#allocation5], %s650
        %s652 = sand.u32 %s391, 1
        %s653 = scalar_lea.vmem [#allocation4], %s652
        // Predicated region
        $region89: #{graph_transformer_encoder.1} parent=83 // pred_check
          %p654 = pneg %p404
        $region90: #{graph_transformer_encoder.1} parent=83 // pred_check_branch
          %656 = sbr.rel (%p654) target = $region92
        $region91: #{graph_transformer_encoder.1} parent=83 // pred_region
          %657 = dma.done %s651, 16
        $region92: #{graph_transformer_encoder.1} parent=83 // pred_fallthru
          _
        %s658 = smul.u32 2, %s37
        %p659 = scmp.lt.s32.totalorder %s658, 1
        %s660 = scalar_select %p659, %s658, 1
        %s661 = smul.addr %s660, 8
        %s662 = scalar_lea.vmem %s0, %s661
        %p663 = pneg %p66
        %p664 = pneg %p63
        %s665 = smul.u32 2, %s37
        %p666 = scmp.lt.s32.totalorder %s665, 1
        %s667 = scalar_select %p666, %s665, 1
        %s668 = smul.addr %s667, 8
        %s669 = scalar_lea.vmem %s1, %s668
        %p670 = pneg %p92
        %p671 = pneg %p89
        %p672 = scmp.lt.s32.totalorder %s38, 1
        %s673 = scalar_select %p672, %s38, 1
        %s674 = smul.addr %s673, 4
        %s675 = smul.addr %s674, 4
        %s676 = scalar_lea.vmem %s2, %s675
        %p677 = pneg %p118
        %p678 = pneg %p115
        %p679 = scmp.lt.s32.totalorder %s38, 1
        %s680 = scalar_select %p679, %s38, 1
        %s681 = scalar_lea.vmem %s3, %s680
        %p682 = pneg %p144
        %p683 = pneg %p141
        %p684 = scmp.lt.s32.totalorder %s38, 1
        %s685 = scalar_select %p684, %s38, 1
        %s686 = smul.addr %s685, 4
        %s687 = smul.addr %s686, 4
        %s688 = scalar_lea.vmem %s4, %s687
        %p689 = pneg %p170
        %p690 = pneg %p167
        %p691 = scmp.lt.s32.totalorder %s38, 1
        %s692 = scalar_select %p691, %s38, 1
        %s693 = scalar_lea.vmem %s5, %s692
        %p694 = pneg %p196
        %p695 = pneg %p193
        %p696 = scmp.lt.s32.totalorder %s38, 1
        %s697 = scalar_select %p696, %s38, 1
        %s698 = smul.addr %s697, 4
        %s699 = smul.addr %s698, 4
        %s700 = scalar_lea.vmem %s6, %s699
        %p701 = pneg %p222
        %p702 = pneg %p219
        %p703 = scmp.lt.s32.totalorder %s38, 1
        %s704 = scalar_select %p703, %s38, 1
        %s705 = scalar_lea.vmem %s7, %s704
        %p706 = pneg %p248
        %p707 = pneg %p245
        %p708 = scmp.lt.s32.totalorder %s38, 1
        %s709 = scalar_select %p708, %s38, 1
        %s710 = scalar_lea.vmem %s8, %s709
        %p711 = pneg %p274
        %p712 = pneg %p271
        %p713 = scmp.lt.s32.totalorder %s38, 1
        %s714 = scalar_select %p713, %s38, 1
        %s715 = scalar_lea.vmem %s9, %s714
        %p716 = pneg %p300
        %p717 = pneg %p297
        %p718 = scmp.lt.s32.totalorder %s38, 1
        %s719 = scalar_select %p718, %s38, 1
        %s720 = smul.addr %s719, 4
        %s721 = smul.addr %s720, 4
        %s722 = scalar_lea.vmem %s10, %s721
        %p723 = pneg %p326
        %p724 = pneg %p323
        %s725 = sand.u32 %s339, 1
        %s726 = scalar_lea.sflag [#allocation3], %s725
        %s727 = sand.u32 %s339, 1
        %s728 = scalar_lea.vmem [#allocation2], %s727
        %p729 = pneg %p352
        %p730 = pneg %p349
        %p731 = scmp.lt.s32.totalorder %s38, 1
        %s732 = scalar_select %p731, %s38, 1
        %s733 = smul.addr %s732, 8
        %s734 = smul.addr %s733, 4
        %s735 = scalar_lea.vmem %s12, %s734
        %p736 = pneg %p378
        %p737 = pneg %p375
        %s738 = sand.u32 %s391, 1
        %s739 = scalar_lea.sflag [#allocation5], %s738
        %s740 = sand.u32 %s391, 1
        %s741 = scalar_lea.vmem [#allocation4], %s740
        %p742 = pneg %p404
        %p743 = pneg %p401
        %p744 = scmp.lt.s32.totalorder %s38, 1
        %s745 = scalar_select %p744, %s38, 1
        %s746 = scalar_lea.vmem %s14, %s745
        %p747 = pneg %p430
        %p748 = pneg %p427
        %p749 = scmp.lt.s32.totalorder %s38, 1
        %s750 = scalar_select %p749, %s38, 1
        %s751 = scalar_lea.vmem %s15, %s750
        %p752 = pneg %p456
        %p753 = pneg %p453
        %p754 = pneg %p482
        %p755 = pneg %p479
        %s756 = smul.u32 2, %s37
        %p757 = scmp.lt.s32.totalorder %s756, 1
        %s758 = scalar_select %p757, %s756, 1
        %s759 = smul.addr %s758, 8
        %s760 = scalar_lea.vmem %s16, %s759
        %s761 = smul.u32 2, %s37
        %p762 = scmp.lt.s32.totalorder %s761, 1
        %s763 = scalar_select %p762, %s761, 1
        %s764 = smul.addr %s763, 8
        %s765 = scalar_lea.vmem %s0, %s764
        %s766 = smul.u32 2, %s37
        %s767 = smul.u32 2, %s37
        %p768 = scmp.lt.s32.totalorder %s767, 1
        %s769 = scalar_select %p768, %s767, 1
        %s770 = smul.addr %s769, 8
        %s771 = scalar_lea.vmem %s1, %s770
        %s772 = smul.u32 2, %s37
        %p773 = scmp.lt.s32.totalorder %s38, 1
        %s774 = scalar_select %p773, %s38, 1
        %s775 = smul.addr %s774, 4
        %s776 = smul.addr %s775, 4
        %s777 = scalar_lea.vmem %s2, %s776
        %p778 = scmp.lt.s32.totalorder %s38, 1
        %s779 = scalar_select %p778, %s38, 1
        %s780 = scalar_lea.vmem %s3, %s779
        %p781 = scmp.lt.s32.totalorder %s38, 1
        %s782 = scalar_select %p781, %s38, 1
        %s783 = smul.addr %s782, 4
        %s784 = smul.addr %s783, 4
        %s785 = scalar_lea.vmem %s4, %s784
        %p786 = scmp.lt.s32.totalorder %s38, 1
        %s787 = scalar_select %p786, %s38, 1
        %s788 = scalar_lea.vmem %s5, %s787
        %p789 = scmp.lt.s32.totalorder %s38, 1
        %s790 = scalar_select %p789, %s38, 1
        %s791 = smul.addr %s790, 4
        %s792 = smul.addr %s791, 4
        %s793 = scalar_lea.vmem %s6, %s792
        %p794 = scmp.lt.s32.totalorder %s38, 1
        %s795 = scalar_select %p794, %s38, 1
        %s796 = scalar_lea.vmem %s7, %s795
        %p797 = scmp.lt.s32.totalorder %s38, 1
        %s798 = scalar_select %p797, %s38, 1
        %s799 = scalar_lea.vmem %s8, %s798
        %p800 = scmp.lt.s32.totalorder %s38, 1
        %s801 = scalar_select %p800, %s38, 1
        %s802 = scalar_lea.vmem %s9, %s801
        %p803 = scmp.lt.s32.totalorder %s38, 1
        %s804 = scalar_select %p803, %s38, 1
        %s805 = smul.addr %s804, 4
        %s806 = smul.addr %s805, 4
        %s807 = scalar_lea.vmem %s10, %s806
        %p808 = scmp.lt.s32.totalorder %s38, 1
        %s809 = scalar_select %p808, %s38, 1
        %s810 = smul.addr %s809, 8
        %s811 = smul.addr %s810, 4
        %s812 = scalar_lea.vmem %s12, %s811
        %p813 = scmp.lt.s32.totalorder %s38, 1
        %s814 = scalar_select %p813, %s38, 1
        %s815 = scalar_lea.vmem %s14, %s814
        %p816 = scmp.lt.s32.totalorder %s38, 1
        %s817 = scalar_select %p816, %s38, 1
        %s818 = scalar_lea.vmem %s15, %s817
        %s819 = smul.u32 2, %s37
        %p820 = scmp.lt.s32.totalorder %s819, 1
        %s821 = scalar_select %p820, %s819, 1
        %s822 = smul.addr %s821, 8
        %s823 = scalar_lea.vmem %s16, %s822
        %s824 = smul.u32 2, %s37
        %p826 = scmp.eq.s32.totalorder %s38, 0
        // Predicated region
        $region93: #{graph_transformer_encoder.1} parent=83 // pred_check
          %p827 = pneg %p826
        $region94: #{graph_transformer_encoder.1} parent=83 // pred_check_branch
          %829 = sbr.rel (%p827) target = $region96
        $region95: #{graph_transformer_encoder.1} parent=83 // pred_region
          %v830 = vld [vmem:[%s765] sm:$0xff]
          %v831 = vld [vmem:[%s765 + $0x8] sm:$0xff]
          %vm832 = vcmask 261120
          %833 = vst.msk [vmem:[%s823] sm:$0xff] %vm832, %v830
          %834 = vst.msk [vmem:[%s823 + $0x8] sm:$0xff] %vm832, %v831
        $region96: #{graph_transformer_encoder.1} parent=83 // pred_fallthru
          _
        %v835 = vld [vmem:[%s823] sm:$0xff]
        %v836 = vld [vmem:[%s823 + $0x8] sm:$0xff]
        %v837 = vld [vmem:[%s771] sm:$0xff]
        %v838 = vld [vmem:[%s771 + $0x8] sm:$0xff]
        %v839 = vpack.c.bf16 %v836, %v835
        %v840 = vadd.f32 %v835, %v837
        %v841 = vadd.f32 %v836, %v838
        %v842 = vpack.c.bf16 %v841, %v840
        %v843 = vld [vmem:[%s777] sm:$0xf]
        %v844 = vld [vmem:[%s777 + $0x4] sm:$0xf]
        %v845 = vld [vmem:[%s777 + $0x8] sm:$0xf]
        %v846 = vld [vmem:[%s777 + $0xc] sm:$0xf]
        %v847 = vld [vmem:[%s780] sm:$0x1]
        %v849 = vlaneseq
        %v850 = vshrl.u32 %v849, 7
        %v851 = vsub.s32 0, %v850
        %v852 = vrot.slane %v847, %v851
        %v858 = vunpack.c.l.b16 %v843
        %v859 = vunpack.c.l.b16 %v844
        %v860 = vunpack.c.l.b16 %v845
        %v861 = vunpack.c.l.b16 %v846
        %v862 = vpack.c.b16 %v859, %v858
        %v863 = vpack.c.b16 %v861, %v860
        %vm866 = vcmask 261120
        %v868 = vsel %vm866, %v842, 0
        %870 = vmatprep.subr.bf16.mxu0 0
        %871 = vmatpush1.bf16.msra.mxu0 0
        %872 = vmatprep.subr.bf16.mxu0 0
        %873 = vmatpush1.bf16.msra.mxu0 0
        %874 = vmatprep.subr.bf16.mxu0 0
        %875 = vmatpush1.bf16.msra.mxu0 0
        %876 = vmatprep.subr.bf16.mxu0 0
        %877 = vmatpush1.bf16.msra.mxu0 0
        %878 = vmatprep.subr.bf16.mxu0 0
        %879 = vmatpush1.bf16.msra.mxu0 0
        %880 = vmatprep.subr.bf16.mxu0 0
        %881 = vmatpush1.bf16.msra.mxu0 0
        %882 = vmatprep.subr.bf16.mxu0 0
        %883 = vmatpush1.bf16.msra.mxu0 %v863
        %884 = vmatprep.subr.bf16.mxu0 0
        %885 = vmatpush1.bf16.msra.mxu0 %v862
        %886 = vmatprep.subr.bf16.mxu0 0
        %887 = vmatpush2.bf16.msra.mxu0 0
        %888 = vmatprep.subr.bf16.mxu0 0
        %889 = vmatpush2.bf16.msra.mxu0 0
        %890 = vmatprep.subr.bf16.mxu0 0
        %891 = vmatpush2.bf16.msra.mxu0 0
        %892 = vmatprep.subr.bf16.mxu0 0
        %893 = vmatpush2.bf16.msra.mxu0 0
        %894 = vmatprep.subr.bf16.mxu0 0
        %895 = vmatpush2.bf16.msra.mxu0 0
        %896 = vmatprep.subr.bf16.mxu0 0
        %897 = vmatpush2.bf16.msra.mxu0 0
        %898 = vmatprep.subr.bf16.mxu0 0
        %899 = vmatpush2.bf16.msra.mxu0 0
        %900 = vmatprep.subr.bf16.mxu0 0
        %901 = vmatpush2.bf16.msra.mxu0 0
        %902 = vmatprep.mubr.bf16.mxu0 0
        %903 = vmatmul.mubr.bf16.gmra.mxu0 %v868
        %v904 = vpop.f32.mrf.mxu0
        %v905 = vadd.f32 %v852, %v904
        %v906 = vpop.f32.mrf.mxu0
        %v907 = vpop.f32.mrf.mxu0
        %v908 = vadd.f32 %v852, %v907
        %v909 = vpop.f32.mrf.mxu0
        %910 = vdwg.mxu0
        %v911 = vld [vmem:[%s785] sm:$0xf]
        %v912 = vld [vmem:[%s785 + $0x4] sm:$0xf]
        %v913 = vld [vmem:[%s785 + $0x8] sm:$0xf]
        %v914 = vld [vmem:[%s785 + $0xc] sm:$0xf]
        %v915 = vld [vmem:[%s788] sm:$0x1]
        %v917 = vlaneseq
        %v918 = vshrl.u32 %v917, 7
        %v919 = vsub.s32 0, %v918
        %v920 = vrot.slane %v915, %v919
        %v926 = vunpack.c.l.b16 %v911
        %v927 = vunpack.c.l.b16 %v912
        %v928 = vunpack.c.l.b16 %v913
        %v929 = vunpack.c.l.b16 %v914
        %v930 = vpack.c.b16 %v927, %v926
        %v931 = vpack.c.b16 %v929, %v928
        %v935 = vsel %vm866, %v839, 0
        %937 = vmatprep.subr.bf16.mxu0 0
        %938 = vmatpush1.bf16.msra.mxu0 0
        %939 = vmatprep.subr.bf16.mxu0 0
        %940 = vmatpush1.bf16.msra.mxu0 0
        %941 = vmatprep.subr.bf16.mxu0 0
        %942 = vmatpush1.bf16.msra.mxu0 0
        %943 = vmatprep.subr.bf16.mxu0 0
        %944 = vmatpush1.bf16.msra.mxu0 0
        %945 = vmatprep.subr.bf16.mxu0 0
        %946 = vmatpush1.bf16.msra.mxu0 0
        %947 = vmatprep.subr.bf16.mxu0 0
        %948 = vmatpush1.bf16.msra.mxu0 0
        %949 = vmatprep.subr.bf16.mxu0 0
        %950 = vmatpush1.bf16.msra.mxu0 %v931
        %951 = vmatprep.subr.bf16.mxu0 0
        %952 = vmatpush1.bf16.msra.mxu0 %v930
        %953 = vmatprep.subr.bf16.mxu0 0
        %954 = vmatpush2.bf16.msra.mxu0 0
        %955 = vmatprep.subr.bf16.mxu0 0
        %956 = vmatpush2.bf16.msra.mxu0 0
        %957 = vmatprep.subr.bf16.mxu0 0
        %958 = vmatpush2.bf16.msra.mxu0 0
        %959 = vmatprep.subr.bf16.mxu0 0
        %960 = vmatpush2.bf16.msra.mxu0 0
        %961 = vmatprep.subr.bf16.mxu0 0
        %962 = vmatpush2.bf16.msra.mxu0 0
        %963 = vmatprep.subr.bf16.mxu0 0
        %964 = vmatpush2.bf16.msra.mxu0 0
        %965 = vmatprep.subr.bf16.mxu0 0
        %966 = vmatpush2.bf16.msra.mxu0 0
        %967 = vmatprep.subr.bf16.mxu0 0
        %968 = vmatpush2.bf16.msra.mxu0 0
        %969 = vmatprep.mubr.bf16.mxu0 0
        %970 = vmatmul.mubr.bf16.gmra.mxu0 %v935
        %v971 = vpop.f32.mrf.mxu0
        %v972 = vadd.f32 %v920, %v971
        %v973 = vpop.f32.mrf.mxu0
        %v974 = vpop.f32.mrf.mxu0
        %v975 = vadd.f32 %v920, %v974
        %v976 = vpop.f32.mrf.mxu0
        %977 = vdwg.mxu0
        %v978 = vpack.c.bf16 %v905, %v905
        %v979 = vpack.c.bf16 %v908, %v908
        %v980 = vpack.c.bf16 %v972, %v972
        %v981 = vpack.c.bf16 %v975, %v975
        %983 = vrot.lane.b32.xlu0 %v978, 96
        %v984 = vpop.permute.xlu0 %983
        %vm985 = vcmask 64512
        %v987 = vsel %vm985, %v978, 0
        %v990 = vsel %vm985, %v984, 0
        %992 = vmatprep.subr.bf16.mxu0 0
        %993 = vmatpush1.bf16.xpose.msra.mxu0 0
        %994 = vmatprep.subr.bf16.mxu0 0
        %995 = vmatpush1.bf16.xpose.msra.mxu0 0
        %996 = vmatprep.subr.bf16.mxu0 0
        %997 = vmatpush1.bf16.xpose.msra.mxu0 0
        %998 = vmatprep.subr.bf16.mxu0 0
        %999 = vmatpush1.bf16.xpose.msra.mxu0 0
        %1000 = vmatprep.subr.bf16.mxu0 0
        %1001 = vmatpush1.bf16.xpose.msra.mxu0 0
        %1002 = vmatprep.subr.bf16.mxu0 0
        %1003 = vmatpush1.bf16.xpose.msra.mxu0 0
        %1004 = vmatprep.subr.bf16.mxu0 0
        %1005 = vmatpush1.bf16.xpose.msra.mxu0 0
        %1006 = vmatprep.subr.bf16.mxu0 0
        %1007 = vmatpush1.bf16.xpose.msra.mxu0 %v990
        %1008 = vmatprep.subr.bf16.mxu0 0
        %1009 = vmatpush2.bf16.xpose.msra.mxu0 0
        %1010 = vmatprep.subr.bf16.mxu0 0
        %1011 = vmatpush2.bf16.xpose.msra.mxu0 0
        %1012 = vmatprep.subr.bf16.mxu0 0
        %1013 = vmatpush2.bf16.xpose.msra.mxu0 0
        %1014 = vmatprep.subr.bf16.mxu0 0
        %1015 = vmatpush2.bf16.xpose.msra.mxu0 0
        %1016 = vmatprep.subr.bf16.mxu0 0
        %1017 = vmatpush2.bf16.xpose.msra.mxu0 0
        %1018 = vmatprep.subr.bf16.mxu0 0
        %1019 = vmatpush2.bf16.xpose.msra.mxu0 0
        %1020 = vmatprep.subr.bf16.mxu0 0
        %1021 = vmatpush2.bf16.xpose.msra.mxu0 0
        %1022 = vmatprep.subr.bf16.mxu0 0
        %1023 = vmatpush2.bf16.xpose.msra.mxu0 0
        %1024 = vmatprep.mubr.bf16.mxu0 0
        %1025 = vmatmul.mubr.bf16.gmra.mxu0 %v987
        %v1026 = vpop.f32.mrf.mxu0
        %v1027 = vadd.f32 0.0, %v1026
        %v1028 = vpop.f32.mrf.mxu0
        %v1029 = vpop.f32.mrf.mxu0
        %v1030 = vpop.f32.mrf.mxu0
        %1031 = vdwg.mxu0
        %1033 = vrot.lane.b32.xlu0 %v979, 96
        %v1034 = vpop.permute.xlu0 %1033
        %v1036 = vsel %vm985, %v979, 0
        %v1039 = vsel %vm985, %v1034, 0
        %1041 = vmatprep.subr.bf16.mxu0 0
        %1042 = vmatpush1.bf16.xpose.msra.mxu0 0
        %1043 = vmatprep.subr.bf16.mxu0 0
        %1044 = vmatpush1.bf16.xpose.msra.mxu0 0
        %1045 = vmatprep.subr.bf16.mxu0 0
        %1046 = vmatpush1.bf16.xpose.msra.mxu0 0
        %1047 = vmatprep.subr.bf16.mxu0 0
        %1048 = vmatpush1.bf16.xpose.msra.mxu0 0
        %1049 = vmatprep.subr.bf16.mxu0 0
        %1050 = vmatpush1.bf16.xpose.msra.mxu0 0
        %1051 = vmatprep.subr.bf16.mxu0 0
        %1052 = vmatpush1.bf16.xpose.msra.mxu0 0
        %1053 = vmatprep.subr.bf16.mxu0 0
        %1054 = vmatpush1.bf16.xpose.msra.mxu0 0
        %1055 = vmatprep.subr.bf16.mxu0 0
        %1056 = vmatpush1.bf16.xpose.msra.mxu0 %v1039
        %1057 = vmatprep.subr.bf16.mxu0 0
        %1058 = vmatpush2.bf16.xpose.msra.mxu0 0
        %1059 = vmatprep.subr.bf16.mxu0 0
        %1060 = vmatpush2.bf16.xpose.msra.mxu0 0
        %1061 = vmatprep.subr.bf16.mxu0 0
        %1062 = vmatpush2.bf16.xpose.msra.mxu0 0
        %1063 = vmatprep.subr.bf16.mxu0 0
        %1064 = vmatpush2.bf16.xpose.msra.mxu0 0
        %1065 = vmatprep.subr.bf16.mxu0 0
        %1066 = vmatpush2.bf16.xpose.msra.mxu0 0
        %1067 = vmatprep.subr.bf16.mxu0 0
        %1068 = vmatpush2.bf16.xpose.msra.mxu0 0
        %1069 = vmatprep.subr.bf16.mxu0 0
        %1070 = vmatpush2.bf16.xpose.msra.mxu0 0
        %1071 = vmatprep.subr.bf16.mxu0 0
        %1072 = vmatpush2.bf16.xpose.msra.mxu0 0
        %1073 = vmatprep.mubr.bf16.mxu0 0
        %1074 = vmatmul.mubr.bf16.gmra.mxu0 %v1036
        %v1075 = vpop.f32.mrf.mxu0
        %v1076 = vadd.f32 0.0, %v1075
        %v1077 = vpop.f32.mrf.mxu0
        %v1078 = vpop.f32.mrf.mxu0
        %v1079 = vpop.f32.mrf.mxu0
        %1080 = vdwg.mxu0
        %v1081 = vmul.f32 %v1027, 0.35355338
        %v1082 = vmul.f32 %v1076, 0.35355338
        %v1083 = vsel %vm985, %v1081, -inf
        %1084 = vmax.xlane.f32.xlu0 %v1083
        %v1085 = vpop.xlane.xlu0 %1084
        %v1086 = vsel %vm985, %v1082, -inf
        %1087 = vmax.xlane.f32.xlu0 %v1086
        %v1088 = vpop.xlane.xlu0 %1087
        %v1089 = vsub.f32 %v1081, %v1085
        %v1090 = vsub.f32 %v1082, %v1088
        %v1091 = vmul.f32 %v1089, 1.442695
        %v1092 = vpow.pop %v1091
        %v1093 = vmul.f32 %v1090, 1.442695
        %v1094 = vpow.pop %v1093
        %v1095 = vsel %vm985, %v1092, 0.0
        %1096 = vadd.xlane.f32.xlu0 %v1095
        %v1097 = vpop.xlane.xlu0 %1096
        %v1098 = vsel %vm985, %v1094, 0.0
        %1099 = vadd.xlane.f32.xlu0 %v1098
        %v1100 = vpop.xlane.xlu0 %1099
        %v1101 = vrcp.pop %v1097
        %v1102 = vrcp.pop %v1100
        %v1103 = vmul.f32 %v1092, %v1101
        %v1104 = vmul.f32 %v1094, %v1102
        %v1105 = vpack.c.bf16 %v1103, %v1103
        %v1106 = vpack.c.bf16 %v1104, %v1104
        %v1108 = vsel %vm985, %v1105, 0
        %vm1110 = vcmask 1043456
        %v1112 = vsel %vm1110, %v980, 0
        %1114 = vmatprep.subr.bf16.mxu0 0
        %1115 = vmatpush1.bf16.msra.mxu0 0
        %1116 = vmatprep.subr.bf16.mxu0 0
        %1117 = vmatpush1.bf16.msra.mxu0 0
        %1118 = vmatprep.subr.bf16.mxu0 0
        %1119 = vmatpush1.bf16.msra.mxu0 0
        %1120 = vmatprep.subr.bf16.mxu0 0
        %1121 = vmatpush1.bf16.msra.mxu0 0
        %1122 = vmatprep.subr.bf16.mxu0 0
        %1123 = vmatpush1.bf16.msra.mxu0 0
        %1124 = vmatprep.subr.bf16.mxu0 0
        %1125 = vmatpush1.bf16.msra.mxu0 0
        %1126 = vmatprep.subr.bf16.mxu0 0
        %1127 = vmatpush1.bf16.msra.mxu0 0
        %1128 = vmatprep.subr.bf16.mxu0 0
        %1129 = vmatpush1.bf16.msra.mxu0 %v1112
        %1130 = vmatprep.subr.bf16.mxu0 0
        %1131 = vmatpush2.bf16.msra.mxu0 0
        %1132 = vmatprep.subr.bf16.mxu0 0
        %1133 = vmatpush2.bf16.msra.mxu0 0
        %1134 = vmatprep.subr.bf16.mxu0 0
        %1135 = vmatpush2.bf16.msra.mxu0 0
        %1136 = vmatprep.subr.bf16.mxu0 0
        %1137 = vmatpush2.bf16.msra.mxu0 0
        %1138 = vmatprep.subr.bf16.mxu0 0
        %1139 = vmatpush2.bf16.msra.mxu0 0
        %1140 = vmatprep.subr.bf16.mxu0 0
        %1141 = vmatpush2.bf16.msra.mxu0 0
        %1142 = vmatprep.subr.bf16.mxu0 0
        %1143 = vmatpush2.bf16.msra.mxu0 0
        %1144 = vmatprep.subr.bf16.mxu0 0
        %1145 = vmatpush2.bf16.msra.mxu0 0
        %1146 = vmatprep.mubr.bf16.mxu0 0
        %1147 = vmatmul.mubr.bf16.gmra.mxu0 %v1108
        %v1148 = vpop.f32.mrf.mxu0
        %v1149 = vadd.f32 0.0, %v1148
        %v1150 = vpop.f32.mrf.mxu0
        %v1151 = vpop.f32.mrf.mxu0
        %v1152 = vpop.f32.mrf.mxu0
        %1153 = vdwg.mxu0
        %v1155 = vsel %vm985, %v1106, 0
        %v1158 = vsel %vm1110, %v981, 0
        %1160 = vmatprep.subr.bf16.mxu0 0
        %1161 = vmatpush1.bf16.msra.mxu0 0
        %1162 = vmatprep.subr.bf16.mxu0 0
        %1163 = vmatpush1.bf16.msra.mxu0 0
        %1164 = vmatprep.subr.bf16.mxu0 0
        %1165 = vmatpush1.bf16.msra.mxu0 0
        %1166 = vmatprep.subr.bf16.mxu0 0
        %1167 = vmatpush1.bf16.msra.mxu0 0
        %1168 = vmatprep.subr.bf16.mxu0 0
        %1169 = vmatpush1.bf16.msra.mxu0 0
        %1170 = vmatprep.subr.bf16.mxu0 0
        %1171 = vmatpush1.bf16.msra.mxu0 0
        %1172 = vmatprep.subr.bf16.mxu0 0
        %1173 = vmatpush1.bf16.msra.mxu0 0
        %1174 = vmatprep.subr.bf16.mxu0 0
        %1175 = vmatpush1.bf16.msra.mxu0 %v1158
        %1176 = vmatprep.subr.bf16.mxu0 0
        %1177 = vmatpush2.bf16.msra.mxu0 0
        %1178 = vmatprep.subr.bf16.mxu0 0
        %1179 = vmatpush2.bf16.msra.mxu0 0
        %1180 = vmatprep.subr.bf16.mxu0 0
        %1181 = vmatpush2.bf16.msra.mxu0 0
        %1182 = vmatprep.subr.bf16.mxu0 0
        %1183 = vmatpush2.bf16.msra.mxu0 0
        %1184 = vmatprep.subr.bf16.mxu0 0
        %1185 = vmatpush2.bf16.msra.mxu0 0
        %1186 = vmatprep.subr.bf16.mxu0 0
        %1187 = vmatpush2.bf16.msra.mxu0 0
        %1188 = vmatprep.subr.bf16.mxu0 0
        %1189 = vmatpush2.bf16.msra.mxu0 0
        %1190 = vmatprep.subr.bf16.mxu0 0
        %1191 = vmatpush2.bf16.msra.mxu0 0
        %1192 = vmatprep.mubr.bf16.mxu0 0
        %1193 = vmatmul.mubr.bf16.gmra.mxu0 %v1155
        %v1194 = vpop.f32.mrf.mxu0
        %v1195 = vadd.f32 0.0, %v1194
        %v1196 = vpop.f32.mrf.mxu0
        %v1197 = vpop.f32.mrf.mxu0
        %v1198 = vpop.f32.mrf.mxu0
        %1199 = vdwg.mxu0
        %1200 = vrot.lane.b32.xlu0 %v978, 120
        %v1201 = vpop.permute.xlu0 %1200
        %1202 = vrot.lane.b32.xlu0 %v978, 88
        %v1203 = vpop.permute.xlu0 %1202
        %v1205 = vsel %vm985, %v1201, 0
        %v1208 = vsel %vm985, %v1203, 0
        %1210 = vmatprep.subr.bf16.mxu0 0
        %1211 = vmatpush1.bf16.xpose.msra.mxu0 0
        %1212 = vmatprep.subr.bf16.mxu0 0
        %1213 = vmatpush1.bf16.xpose.msra.mxu0 0
        %1214 = vmatprep.subr.bf16.mxu0 0
        %1215 = vmatpush1.bf16.xpose.msra.mxu0 0
        %1216 = vmatprep.subr.bf16.mxu0 0
        %1217 = vmatpush1.bf16.xpose.msra.mxu0 0
        %1218 = vmatprep.subr.bf16.mxu0 0
        %1219 = vmatpush1.bf16.xpose.msra.mxu0 0
        %1220 = vmatprep.subr.bf16.mxu0 0
        %1221 = vmatpush1.bf16.xpose.msra.mxu0 0
        %1222 = vmatprep.subr.bf16.mxu0 0
        %1223 = vmatpush1.bf16.xpose.msra.mxu0 0
        %1224 = vmatprep.subr.bf16.mxu0 0
        %1225 = vmatpush1.bf16.xpose.msra.mxu0 %v1208
        %1226 = vmatprep.subr.bf16.mxu0 0
        %1227 = vmatpush2.bf16.xpose.msra.mxu0 0
        %1228 = vmatprep.subr.bf16.mxu0 0
        %1229 = vmatpush2.bf16.xpose.msra.mxu0 0
        %1230 = vmatprep.subr.bf16.mxu0 0
        %1231 = vmatpush2.bf16.xpose.msra.mxu0 0
        %1232 = vmatprep.subr.bf16.mxu0 0
        %1233 = vmatpush2.bf16.xpose.msra.mxu0 0
        %1234 = vmatprep.subr.bf16.mxu0 0
        %1235 = vmatpush2.bf16.xpose.msra.mxu0 0
        %1236 = vmatprep.subr.bf16.mxu0 0
        %1237 = vmatpush2.bf16.xpose.msra.mxu0 0
        %1238 = vmatprep.subr.bf16.mxu0 0
        %1239 = vmatpush2.bf16.xpose.msra.mxu0 0
        %1240 = vmatprep.subr.bf16.mxu0 0
        %1241 = vmatpush2.bf16.xpose.msra.mxu0 0
        %1242 = vmatprep.mubr.bf16.mxu0 0
        %1243 = vmatmul.mubr.bf16.gmra.mxu0 %v1205
        %v1244 = vpop.f32.mrf.mxu0
        %v1245 = vadd.f32 0.0, %v1244
        %v1246 = vpop.f32.mrf.mxu0
        %v1247 = vpop.f32.mrf.mxu0
        %v1248 = vpop.f32.mrf.mxu0
        %1249 = vdwg.mxu0
        %1250 = vrot.lane.b32.xlu0 %v979, 120
        %v1251 = vpop.permute.xlu0 %1250
        %1252 = vrot.lane.b32.xlu0 %v979, 88
        %v1253 = vpop.permute.xlu0 %1252
        %v1255 = vsel %vm985, %v1251, 0
        %v1258 = vsel %vm985, %v1253, 0
        %1260 = vmatprep.subr.bf16.mxu0 0
        %1261 = vmatpush1.bf16.xpose.msra.mxu0 0
        %1262 = vmatprep.subr.bf16.mxu0 0
        %1263 = vmatpush1.bf16.xpose.msra.mxu0 0
        %1264 = vmatprep.subr.bf16.mxu0 0
        %1265 = vmatpush1.bf16.xpose.msra.mxu0 0
        %1266 = vmatprep.subr.bf16.mxu0 0
        %1267 = vmatpush1.bf16.xpose.msra.mxu0 0
        %1268 = vmatprep.subr.bf16.mxu0 0
        %1269 = vmatpush1.bf16.xpose.msra.mxu0 0
        %1270 = vmatprep.subr.bf16.mxu0 0
        %1271 = vmatpush1.bf16.xpose.msra.mxu0 0
        %1272 = vmatprep.subr.bf16.mxu0 0
        %1273 = vmatpush1.bf16.xpose.msra.mxu0 0
        %1274 = vmatprep.subr.bf16.mxu0 0
        %1275 = vmatpush1.bf16.xpose.msra.mxu0 %v1258
        %1276 = vmatprep.subr.bf16.mxu0 0
        %1277 = vmatpush2.bf16.xpose.msra.mxu0 0
        %1278 = vmatprep.subr.bf16.mxu0 0
        %1279 = vmatpush2.bf16.xpose.msra.mxu0 0
        %1280 = vmatprep.subr.bf16.mxu0 0
        %1281 = vmatpush2.bf16.xpose.msra.mxu0 0
        %1282 = vmatprep.subr.bf16.mxu0 0
        %1283 = vmatpush2.bf16.xpose.msra.mxu0 0
        %1284 = vmatprep.subr.bf16.mxu0 0
        %1285 = vmatpush2.bf16.xpose.msra.mxu0 0
        %1286 = vmatprep.subr.bf16.mxu0 0
        %1287 = vmatpush2.bf16.xpose.msra.mxu0 0
        %1288 = vmatprep.subr.bf16.mxu0 0
        %1289 = vmatpush2.bf16.xpose.msra.mxu0 0
        %1290 = vmatprep.subr.bf16.mxu0 0
        %1291 = vmatpush2.bf16.xpose.msra.mxu0 0
        %1292 = vmatprep.mubr.bf16.mxu0 0
        %1293 = vmatmul.mubr.bf16.gmra.mxu0 %v1255
        %v1294 = vpop.f32.mrf.mxu0
        %v1295 = vadd.f32 0.0, %v1294
        %v1296 = vpop.f32.mrf.mxu0
        %v1297 = vpop.f32.mrf.mxu0
        %v1298 = vpop.f32.mrf.mxu0
        %1299 = vdwg.mxu0
        %v1300 = vmul.f32 %v1245, 0.35355338
        %v1301 = vmul.f32 %v1295, 0.35355338
        %v1302 = vsel %vm985, %v1300, -inf
        %1303 = vmax.xlane.f32.xlu0 %v1302
        %v1304 = vpop.xlane.xlu0 %1303
        %v1305 = vsel %vm985, %v1301, -inf
        %1306 = vmax.xlane.f32.xlu0 %v1305
        %v1307 = vpop.xlane.xlu0 %1306
        %v1308 = vsub.f32 %v1300, %v1304
        %v1309 = vsub.f32 %v1301, %v1307
        %v1310 = vmul.f32 %v1308, 1.442695
        %v1311 = vpow.pop %v1310
        %v1312 = vmul.f32 %v1309, 1.442695
        %v1313 = vpow.pop %v1312
        %v1314 = vsel %vm985, %v1311, 0.0
        %1315 = vadd.xlane.f32.xlu0 %v1314
        %v1316 = vpop.xlane.xlu0 %1315
        %v1317 = vsel %vm985, %v1313, 0.0
        %1318 = vadd.xlane.f32.xlu0 %v1317
        %v1319 = vpop.xlane.xlu0 %1318
        %v1320 = vrcp.pop %v1316
        %v1321 = vrcp.pop %v1319
        %v1322 = vmul.f32 %v1311, %v1320
        %v1323 = vmul.f32 %v1313, %v1321
        %v1324 = vpack.c.bf16 %v1322, %v1322
        %v1325 = vpack.c.bf16 %v1323, %v1323
        %1327 = vrot.lane.b32.xlu0 %v980, 120
        %v1328 = vpop.permute.xlu0 %1327
        %v1330 = vsel %vm985, %v1324, 0
        %v1333 = vsel %vm1110, %v1328, 0
        %1335 = vmatprep.subr.bf16.mxu0 0
        %1336 = vmatpush1.bf16.msra.mxu0 0
        %1337 = vmatprep.subr.bf16.mxu0 0
        %1338 = vmatpush1.bf16.msra.mxu0 0
        %1339 = vmatprep.subr.bf16.mxu0 0
        %1340 = vmatpush1.bf16.msra.mxu0 0
        %1341 = vmatprep.subr.bf16.mxu0 0
        %1342 = vmatpush1.bf16.msra.mxu0 0
        %1343 = vmatprep.subr.bf16.mxu0 0
        %1344 = vmatpush1.bf16.msra.mxu0 0
        %1345 = vmatprep.subr.bf16.mxu0 0
        %1346 = vmatpush1.bf16.msra.mxu0 0
        %1347 = vmatprep.subr.bf16.mxu0 0
        %1348 = vmatpush1.bf16.msra.mxu0 0
        %1349 = vmatprep.subr.bf16.mxu0 0
        %1350 = vmatpush1.bf16.msra.mxu0 %v1333
        %1351 = vmatprep.subr.bf16.mxu0 0
        %1352 = vmatpush2.bf16.msra.mxu0 0
        %1353 = vmatprep.subr.bf16.mxu0 0
        %1354 = vmatpush2.bf16.msra.mxu0 0
        %1355 = vmatprep.subr.bf16.mxu0 0
        %1356 = vmatpush2.bf16.msra.mxu0 0
        %1357 = vmatprep.subr.bf16.mxu0 0
        %1358 = vmatpush2.bf16.msra.mxu0 0
        %1359 = vmatprep.subr.bf16.mxu0 0
        %1360 = vmatpush2.bf16.msra.mxu0 0
        %1361 = vmatprep.subr.bf16.mxu0 0
        %1362 = vmatpush2.bf16.msra.mxu0 0
        %1363 = vmatprep.subr.bf16.mxu0 0
        %1364 = vmatpush2.bf16.msra.mxu0 0
        %1365 = vmatprep.subr.bf16.mxu0 0
        %1366 = vmatpush2.bf16.msra.mxu0 0
        %1367 = vmatprep.mubr.bf16.mxu0 0
        %1368 = vmatmul.mubr.bf16.gmra.mxu0 %v1330
        %v1369 = vpop.f32.mrf.mxu0
        %v1370 = vadd.f32 0.0, %v1369
        %v1371 = vpop.f32.mrf.mxu0
        %v1372 = vpop.f32.mrf.mxu0
        %v1373 = vpop.f32.mrf.mxu0
        %1374 = vdwg.mxu0
        %1376 = vrot.lane.b32.xlu0 %v981, 120
        %v1377 = vpop.permute.xlu0 %1376
        %v1379 = vsel %vm985, %v1325, 0
        %v1382 = vsel %vm1110, %v1377, 0
        %1384 = vmatprep.subr.bf16.mxu0 0
        %1385 = vmatpush1.bf16.msra.mxu0 0
        %1386 = vmatprep.subr.bf16.mxu0 0
        %1387 = vmatpush1.bf16.msra.mxu0 0
        %1388 = vmatprep.subr.bf16.mxu0 0
        %1389 = vmatpush1.bf16.msra.mxu0 0
        %1390 = vmatprep.subr.bf16.mxu0 0
        %1391 = vmatpush1.bf16.msra.mxu0 0
        %1392 = vmatprep.subr.bf16.mxu0 0
        %1393 = vmatpush1.bf16.msra.mxu0 0
        %1394 = vmatprep.subr.bf16.mxu0 0
        %1395 = vmatpush1.bf16.msra.mxu0 0
        %1396 = vmatprep.subr.bf16.mxu0 0
        %1397 = vmatpush1.bf16.msra.mxu0 0
        %1398 = vmatprep.subr.bf16.mxu0 0
        %1399 = vmatpush1.bf16.msra.mxu0 %v1382
        %1400 = vmatprep.subr.bf16.mxu0 0
        %1401 = vmatpush2.bf16.msra.mxu0 0
        %1402 = vmatprep.subr.bf16.mxu0 0
        %1403 = vmatpush2.bf16.msra.mxu0 0
        %1404 = vmatprep.subr.bf16.mxu0 0
        %1405 = vmatpush2.bf16.msra.mxu0 0
        %1406 = vmatprep.subr.bf16.mxu0 0
        %1407 = vmatpush2.bf16.msra.mxu0 0
        %1408 = vmatprep.subr.bf16.mxu0 0
        %1409 = vmatpush2.bf16.msra.mxu0 0
        %1410 = vmatprep.subr.bf16.mxu0 0
        %1411 = vmatpush2.bf16.msra.mxu0 0
        %1412 = vmatprep.subr.bf16.mxu0 0
        %1413 = vmatpush2.bf16.msra.mxu0 0
        %1414 = vmatprep.subr.bf16.mxu0 0
        %1415 = vmatpush2.bf16.msra.mxu0 0
        %1416 = vmatprep.mubr.bf16.mxu0 0
        %1417 = vmatmul.mubr.bf16.gmra.mxu0 %v1379
        %v1418 = vpop.f32.mrf.mxu0
        %v1419 = vadd.f32 0.0, %v1418
        %v1420 = vpop.f32.mrf.mxu0
        %v1421 = vpop.f32.mrf.mxu0
        %v1422 = vpop.f32.mrf.mxu0
        %1423 = vdwg.mxu0
        %1424 = vrot.lane.b32.xlu0 %v978, 112
        %v1425 = vpop.permute.xlu0 %1424
        %1426 = vrot.lane.b32.xlu0 %v978, 80
        %v1427 = vpop.permute.xlu0 %1426
        %v1429 = vsel %vm985, %v1425, 0
        %v1432 = vsel %vm985, %v1427, 0
        %1434 = vmatprep.subr.bf16.mxu0 0
        %1435 = vmatpush1.bf16.xpose.msra.mxu0 0
        %1436 = vmatprep.subr.bf16.mxu0 0
        %1437 = vmatpush1.bf16.xpose.msra.mxu0 0
        %1438 = vmatprep.subr.bf16.mxu0 0
        %1439 = vmatpush1.bf16.xpose.msra.mxu0 0
        %1440 = vmatprep.subr.bf16.mxu0 0
        %1441 = vmatpush1.bf16.xpose.msra.mxu0 0
        %1442 = vmatprep.subr.bf16.mxu0 0
        %1443 = vmatpush1.bf16.xpose.msra.mxu0 0
        %1444 = vmatprep.subr.bf16.mxu0 0
        %1445 = vmatpush1.bf16.xpose.msra.mxu0 0
        %1446 = vmatprep.subr.bf16.mxu0 0
        %1447 = vmatpush1.bf16.xpose.msra.mxu0 0
        %1448 = vmatprep.subr.bf16.mxu0 0
        %1449 = vmatpush1.bf16.xpose.msra.mxu0 %v1432
        %1450 = vmatprep.subr.bf16.mxu0 0
        %1451 = vmatpush2.bf16.xpose.msra.mxu0 0
        %1452 = vmatprep.subr.bf16.mxu0 0
        %1453 = vmatpush2.bf16.xpose.msra.mxu0 0
        %1454 = vmatprep.subr.bf16.mxu0 0
        %1455 = vmatpush2.bf16.xpose.msra.mxu0 0
        %1456 = vmatprep.subr.bf16.mxu0 0
        %1457 = vmatpush2.bf16.xpose.msra.mxu0 0
        %1458 = vmatprep.subr.bf16.mxu0 0
        %1459 = vmatpush2.bf16.xpose.msra.mxu0 0
        %1460 = vmatprep.subr.bf16.mxu0 0
        %1461 = vmatpush2.bf16.xpose.msra.mxu0 0
        %1462 = vmatprep.subr.bf16.mxu0 0
        %1463 = vmatpush2.bf16.xpose.msra.mxu0 0
        %1464 = vmatprep.subr.bf16.mxu0 0
        %1465 = vmatpush2.bf16.xpose.msra.mxu0 0
        %1466 = vmatprep.mubr.bf16.mxu0 0
        %1467 = vmatmul.mubr.bf16.gmra.mxu0 %v1429
        %v1468 = vpop.f32.mrf.mxu0
        %v1469 = vadd.f32 0.0, %v1468
        %v1470 = vpop.f32.mrf.mxu0
        %v1471 = vpop.f32.mrf.mxu0
        %v1472 = vpop.f32.mrf.mxu0
        %1473 = vdwg.mxu0
        %1474 = vrot.lane.b32.xlu0 %v979, 112
        %v1475 = vpop.permute.xlu0 %1474
        %1476 = vrot.lane.b32.xlu0 %v979, 80
        %v1477 = vpop.permute.xlu0 %1476
        %v1479 = vsel %vm985, %v1475, 0
        %v1482 = vsel %vm985, %v1477, 0
        %1484 = vmatprep.subr.bf16.mxu0 0
        %1485 = vmatpush1.bf16.xpose.msra.mxu0 0
        %1486 = vmatprep.subr.bf16.mxu0 0
        %1487 = vmatpush1.bf16.xpose.msra.mxu0 0
        %1488 = vmatprep.subr.bf16.mxu0 0
        %1489 = vmatpush1.bf16.xpose.msra.mxu0 0
        %1490 = vmatprep.subr.bf16.mxu0 0
        %1491 = vmatpush1.bf16.xpose.msra.mxu0 0
        %1492 = vmatprep.subr.bf16.mxu0 0
        %1493 = vmatpush1.bf16.xpose.msra.mxu0 0
        %1494 = vmatprep.subr.bf16.mxu0 0
        %1495 = vmatpush1.bf16.xpose.msra.mxu0 0
        %1496 = vmatprep.subr.bf16.mxu0 0
        %1497 = vmatpush1.bf16.xpose.msra.mxu0 0
        %1498 = vmatprep.subr.bf16.mxu0 0
        %1499 = vmatpush1.bf16.xpose.msra.mxu0 %v1482
        %1500 = vmatprep.subr.bf16.mxu0 0
        %1501 = vmatpush2.bf16.xpose.msra.mxu0 0
        %1502 = vmatprep.subr.bf16.mxu0 0
        %1503 = vmatpush2.bf16.xpose.msra.mxu0 0
        %1504 = vmatprep.subr.bf16.mxu0 0
        %1505 = vmatpush2.bf16.xpose.msra.mxu0 0
        %1506 = vmatprep.subr.bf16.mxu0 0
        %1507 = vmatpush2.bf16.xpose.msra.mxu0 0
        %1508 = vmatprep.subr.bf16.mxu0 0
        %1509 = vmatpush2.bf16.xpose.msra.mxu0 0
        %1510 = vmatprep.subr.bf16.mxu0 0
        %1511 = vmatpush2.bf16.xpose.msra.mxu0 0
        %1512 = vmatprep.subr.bf16.mxu0 0
        %1513 = vmatpush2.bf16.xpose.msra.mxu0 0
        %1514 = vmatprep.subr.bf16.mxu0 0
        %1515 = vmatpush2.bf16.xpose.msra.mxu0 0
        %1516 = vmatprep.mubr.bf16.mxu0 0
        %1517 = vmatmul.mubr.bf16.gmra.mxu0 %v1479
        %v1518 = vpop.f32.mrf.mxu0
        %v1519 = vadd.f32 0.0, %v1518
        %v1520 = vpop.f32.mrf.mxu0
        %v1521 = vpop.f32.mrf.mxu0
        %v1522 = vpop.f32.mrf.mxu0
        %1523 = vdwg.mxu0
        %v1524 = vmul.f32 %v1469, 0.35355338
        %v1525 = vmul.f32 %v1519, 0.35355338
        %v1526 = vsel %vm985, %v1524, -inf
        %1527 = vmax.xlane.f32.xlu0 %v1526
        %v1528 = vpop.xlane.xlu0 %1527
        %v1529 = vsel %vm985, %v1525, -inf
        %1530 = vmax.xlane.f32.xlu0 %v1529
        %v1531 = vpop.xlane.xlu0 %1530
        %v1532 = vsub.f32 %v1524, %v1528
        %v1533 = vsub.f32 %v1525, %v1531
        %v1534 = vmul.f32 %v1532, 1.442695
        %v1535 = vpow.pop %v1534
        %v1536 = vmul.f32 %v1533, 1.442695
        %v1537 = vpow.pop %v1536
        %v1538 = vsel %vm985, %v1535, 0.0
        %1539 = vadd.xlane.f32.xlu0 %v1538
        %v1540 = vpop.xlane.xlu0 %1539
        %v1541 = vsel %vm985, %v1537, 0.0
        %1542 = vadd.xlane.f32.xlu0 %v1541
        %v1543 = vpop.xlane.xlu0 %1542
        %v1544 = vrcp.pop %v1540
        %v1545 = vrcp.pop %v1543
        %v1546 = vmul.f32 %v1535, %v1544
        %v1547 = vmul.f32 %v1537, %v1545
        %v1548 = vpack.c.bf16 %v1546, %v1546
        %v1549 = vpack.c.bf16 %v1547, %v1547
        %1550 = vrot.lane.b32.xlu0 %v980, 112
        %v1551 = vpop.permute.xlu0 %1550
        %v1553 = vsel %vm985, %v1548, 0
        %v1556 = vsel %vm1110, %v1551, 0
        %1558 = vmatprep.subr.bf16.mxu0 0
        %1559 = vmatpush1.bf16.msra.mxu0 0
        %1560 = vmatprep.subr.bf16.mxu0 0
        %1561 = vmatpush1.bf16.msra.mxu0 0
        %1562 = vmatprep.subr.bf16.mxu0 0
        %1563 = vmatpush1.bf16.msra.mxu0 0
        %1564 = vmatprep.subr.bf16.mxu0 0
        %1565 = vmatpush1.bf16.msra.mxu0 0
        %1566 = vmatprep.subr.bf16.mxu0 0
        %1567 = vmatpush1.bf16.msra.mxu0 0
        %1568 = vmatprep.subr.bf16.mxu0 0
        %1569 = vmatpush1.bf16.msra.mxu0 0
        %1570 = vmatprep.subr.bf16.mxu0 0
        %1571 = vmatpush1.bf16.msra.mxu0 0
        %1572 = vmatprep.subr.bf16.mxu0 0
        %1573 = vmatpush1.bf16.msra.mxu0 %v1556
        %1574 = vmatprep.subr.bf16.mxu0 0
        %1575 = vmatpush2.bf16.msra.mxu0 0
        %1576 = vmatprep.subr.bf16.mxu0 0
        %1577 = vmatpush2.bf16.msra.mxu0 0
        %1578 = vmatprep.subr.bf16.mxu0 0
        %1579 = vmatpush2.bf16.msra.mxu0 0
        %1580 = vmatprep.subr.bf16.mxu0 0
        %1581 = vmatpush2.bf16.msra.mxu0 0
        %1582 = vmatprep.subr.bf16.mxu0 0
        %1583 = vmatpush2.bf16.msra.mxu0 0
        %1584 = vmatprep.subr.bf16.mxu0 0
        %1585 = vmatpush2.bf16.msra.mxu0 0
        %1586 = vmatprep.subr.bf16.mxu0 0
        %1587 = vmatpush2.bf16.msra.mxu0 0
        %1588 = vmatprep.subr.bf16.mxu0 0
        %1589 = vmatpush2.bf16.msra.mxu0 0
        %1590 = vmatprep.mubr.bf16.mxu0 0
        %1591 = vmatmul.mubr.bf16.gmra.mxu0 %v1553
        %v1592 = vpop.f32.mrf.mxu0
        %v1593 = vadd.f32 0.0, %v1592
        %v1594 = vpop.f32.mrf.mxu0
        %v1595 = vpop.f32.mrf.mxu0
        %v1596 = vpop.f32.mrf.mxu0
        %1597 = vdwg.mxu0
        %1598 = vrot.lane.b32.xlu0 %v981, 112
        %v1599 = vpop.permute.xlu0 %1598
        %v1601 = vsel %vm985, %v1549, 0
        %v1604 = vsel %vm1110, %v1599, 0
        %1606 = vmatprep.subr.bf16.mxu0 0
        %1607 = vmatpush1.bf16.msra.mxu0 0
        %1608 = vmatprep.subr.bf16.mxu0 0
        %1609 = vmatpush1.bf16.msra.mxu0 0
        %1610 = vmatprep.subr.bf16.mxu0 0
        %1611 = vmatpush1.bf16.msra.mxu0 0
        %1612 = vmatprep.subr.bf16.mxu0 0
        %1613 = vmatpush1.bf16.msra.mxu0 0
        %1614 = vmatprep.subr.bf16.mxu0 0
        %1615 = vmatpush1.bf16.msra.mxu0 0
        %1616 = vmatprep.subr.bf16.mxu0 0
        %1617 = vmatpush1.bf16.msra.mxu0 0
        %1618 = vmatprep.subr.bf16.mxu0 0
        %1619 = vmatpush1.bf16.msra.mxu0 0
        %1620 = vmatprep.subr.bf16.mxu0 0
        %1621 = vmatpush1.bf16.msra.mxu0 %v1604
        %1622 = vmatprep.subr.bf16.mxu0 0
        %1623 = vmatpush2.bf16.msra.mxu0 0
        %1624 = vmatprep.subr.bf16.mxu0 0
        %1625 = vmatpush2.bf16.msra.mxu0 0
        %1626 = vmatprep.subr.bf16.mxu0 0
        %1627 = vmatpush2.bf16.msra.mxu0 0
        %1628 = vmatprep.subr.bf16.mxu0 0
        %1629 = vmatpush2.bf16.msra.mxu0 0
        %1630 = vmatprep.subr.bf16.mxu0 0
        %1631 = vmatpush2.bf16.msra.mxu0 0
        %1632 = vmatprep.subr.bf16.mxu0 0
        %1633 = vmatpush2.bf16.msra.mxu0 0
        %1634 = vmatprep.subr.bf16.mxu0 0
        %1635 = vmatpush2.bf16.msra.mxu0 0
        %1636 = vmatprep.subr.bf16.mxu0 0
        %1637 = vmatpush2.bf16.msra.mxu0 0
        %1638 = vmatprep.mubr.bf16.mxu0 0
        %1639 = vmatmul.mubr.bf16.gmra.mxu0 %v1601
        %v1640 = vpop.f32.mrf.mxu0
        %v1641 = vadd.f32 0.0, %v1640
        %v1642 = vpop.f32.mrf.mxu0
        %v1643 = vpop.f32.mrf.mxu0
        %v1644 = vpop.f32.mrf.mxu0
        %1645 = vdwg.mxu0
        %1646 = vrot.lane.b32.xlu0 %v978, 104
        %v1647 = vpop.permute.xlu0 %1646
        %1648 = vrot.lane.b32.xlu0 %v978, 72
        %v1649 = vpop.permute.xlu0 %1648
        %v1651 = vsel %vm985, %v1647, 0
        %v1654 = vsel %vm985, %v1649, 0
        %1656 = vmatprep.subr.bf16.mxu0 0
        %1657 = vmatpush1.bf16.xpose.msra.mxu0 0
        %1658 = vmatprep.subr.bf16.mxu0 0
        %1659 = vmatpush1.bf16.xpose.msra.mxu0 0
        %1660 = vmatprep.subr.bf16.mxu0 0
        %1661 = vmatpush1.bf16.xpose.msra.mxu0 0
        %1662 = vmatprep.subr.bf16.mxu0 0
        %1663 = vmatpush1.bf16.xpose.msra.mxu0 0
        %1664 = vmatprep.subr.bf16.mxu0 0
        %1665 = vmatpush1.bf16.xpose.msra.mxu0 0
        %1666 = vmatprep.subr.bf16.mxu0 0
        %1667 = vmatpush1.bf16.xpose.msra.mxu0 0
        %1668 = vmatprep.subr.bf16.mxu0 0
        %1669 = vmatpush1.bf16.xpose.msra.mxu0 0
        %1670 = vmatprep.subr.bf16.mxu0 0
        %1671 = vmatpush1.bf16.xpose.msra.mxu0 %v1654
        %1672 = vmatprep.subr.bf16.mxu0 0
        %1673 = vmatpush2.bf16.xpose.msra.mxu0 0
        %1674 = vmatprep.subr.bf16.mxu0 0
        %1675 = vmatpush2.bf16.xpose.msra.mxu0 0
        %1676 = vmatprep.subr.bf16.mxu0 0
        %1677 = vmatpush2.bf16.xpose.msra.mxu0 0
        %1678 = vmatprep.subr.bf16.mxu0 0
        %1679 = vmatpush2.bf16.xpose.msra.mxu0 0
        %1680 = vmatprep.subr.bf16.mxu0 0
        %1681 = vmatpush2.bf16.xpose.msra.mxu0 0
        %1682 = vmatprep.subr.bf16.mxu0 0
        %1683 = vmatpush2.bf16.xpose.msra.mxu0 0
        %1684 = vmatprep.subr.bf16.mxu0 0
        %1685 = vmatpush2.bf16.xpose.msra.mxu0 0
        %1686 = vmatprep.subr.bf16.mxu0 0
        %1687 = vmatpush2.bf16.xpose.msra.mxu0 0
        %1688 = vmatprep.mubr.bf16.mxu0 0
        %1689 = vmatmul.mubr.bf16.gmra.mxu0 %v1651
        %v1690 = vpop.f32.mrf.mxu0
        %v1691 = vadd.f32 0.0, %v1690
        %v1692 = vpop.f32.mrf.mxu0
        %v1693 = vpop.f32.mrf.mxu0
        %v1694 = vpop.f32.mrf.mxu0
        %1695 = vdwg.mxu0
        %1696 = vrot.lane.b32.xlu0 %v979, 104
        %v1697 = vpop.permute.xlu0 %1696
        %1698 = vrot.lane.b32.xlu0 %v979, 72
        %v1699 = vpop.permute.xlu0 %1698
        %v1701 = vsel %vm985, %v1697, 0
        %v1704 = vsel %vm985, %v1699, 0
        %1706 = vmatprep.subr.bf16.mxu0 0
        %1707 = vmatpush1.bf16.xpose.msra.mxu0 0
        %1708 = vmatprep.subr.bf16.mxu0 0
        %1709 = vmatpush1.bf16.xpose.msra.mxu0 0
        %1710 = vmatprep.subr.bf16.mxu0 0
        %1711 = vmatpush1.bf16.xpose.msra.mxu0 0
        %1712 = vmatprep.subr.bf16.mxu0 0
        %1713 = vmatpush1.bf16.xpose.msra.mxu0 0
        %1714 = vmatprep.subr.bf16.mxu0 0
        %1715 = vmatpush1.bf16.xpose.msra.mxu0 0
        %1716 = vmatprep.subr.bf16.mxu0 0
        %1717 = vmatpush1.bf16.xpose.msra.mxu0 0
        %1718 = vmatprep.subr.bf16.mxu0 0
        %1719 = vmatpush1.bf16.xpose.msra.mxu0 0
        %1720 = vmatprep.subr.bf16.mxu0 0
        %1721 = vmatpush1.bf16.xpose.msra.mxu0 %v1704
        %1722 = vmatprep.subr.bf16.mxu0 0
        %1723 = vmatpush2.bf16.xpose.msra.mxu0 0
        %1724 = vmatprep.subr.bf16.mxu0 0
        %1725 = vmatpush2.bf16.xpose.msra.mxu0 0
        %1726 = vmatprep.subr.bf16.mxu0 0
        %1727 = vmatpush2.bf16.xpose.msra.mxu0 0
        %1728 = vmatprep.subr.bf16.mxu0 0
        %1729 = vmatpush2.bf16.xpose.msra.mxu0 0
        %1730 = vmatprep.subr.bf16.mxu0 0
        %1731 = vmatpush2.bf16.xpose.msra.mxu0 0
        %1732 = vmatprep.subr.bf16.mxu0 0
        %1733 = vmatpush2.bf16.xpose.msra.mxu0 0
        %1734 = vmatprep.subr.bf16.mxu0 0
        %1735 = vmatpush2.bf16.xpose.msra.mxu0 0
        %1736 = vmatprep.subr.bf16.mxu0 0
        %1737 = vmatpush2.bf16.xpose.msra.mxu0 0
        %1738 = vmatprep.mubr.bf16.mxu0 0
        %1739 = vmatmul.mubr.bf16.gmra.mxu0 %v1701
        %v1740 = vpop.f32.mrf.mxu0
        %v1741 = vadd.f32 0.0, %v1740
        %v1742 = vpop.f32.mrf.mxu0
        %v1743 = vpop.f32.mrf.mxu0
        %v1744 = vpop.f32.mrf.mxu0
        %1745 = vdwg.mxu0
        %v1746 = vmul.f32 %v1691, 0.35355338
        %v1747 = vmul.f32 %v1741, 0.35355338
        %v1748 = vsel %vm985, %v1746, -inf
        %1749 = vmax.xlane.f32.xlu0 %v1748
        %v1750 = vpop.xlane.xlu0 %1749
        %v1751 = vsel %vm985, %v1747, -inf
        %1752 = vmax.xlane.f32.xlu0 %v1751
        %v1753 = vpop.xlane.xlu0 %1752
        %v1754 = vsub.f32 %v1746, %v1750
        %v1755 = vsub.f32 %v1747, %v1753
        %v1756 = vmul.f32 %v1754, 1.442695
        %v1757 = vpow.pop %v1756
        %v1758 = vmul.f32 %v1755, 1.442695
        %v1759 = vpow.pop %v1758
        %v1760 = vsel %vm985, %v1757, 0.0
        %1761 = vadd.xlane.f32.xlu0 %v1760
        %v1762 = vpop.xlane.xlu0 %1761
        %v1763 = vsel %vm985, %v1759, 0.0
        %1764 = vadd.xlane.f32.xlu0 %v1763
        %v1765 = vpop.xlane.xlu0 %1764
        %v1766 = vrcp.pop %v1762
        %v1767 = vrcp.pop %v1765
        %v1768 = vmul.f32 %v1757, %v1766
        %v1769 = vmul.f32 %v1759, %v1767
        %v1770 = vpack.c.bf16 %v1768, %v1768
        %v1771 = vpack.c.bf16 %v1769, %v1769
        %1772 = vrot.lane.b32.xlu0 %v980, 104
        %v1773 = vpop.permute.xlu0 %1772
        %v1775 = vsel %vm985, %v1770, 0
        %v1778 = vsel %vm1110, %v1773, 0
        %1780 = vmatprep.subr.bf16.mxu0 0
        %1781 = vmatpush1.bf16.msra.mxu0 0
        %1782 = vmatprep.subr.bf16.mxu0 0
        %1783 = vmatpush1.bf16.msra.mxu0 0
        %1784 = vmatprep.subr.bf16.mxu0 0
        %1785 = vmatpush1.bf16.msra.mxu0 0
        %1786 = vmatprep.subr.bf16.mxu0 0
        %1787 = vmatpush1.bf16.msra.mxu0 0
        %1788 = vmatprep.subr.bf16.mxu0 0
        %1789 = vmatpush1.bf16.msra.mxu0 0
        %1790 = vmatprep.subr.bf16.mxu0 0
        %1791 = vmatpush1.bf16.msra.mxu0 0
        %1792 = vmatprep.subr.bf16.mxu0 0
        %1793 = vmatpush1.bf16.msra.mxu0 0
        %1794 = vmatprep.subr.bf16.mxu0 0
        %1795 = vmatpush1.bf16.msra.mxu0 %v1778
        %1796 = vmatprep.subr.bf16.mxu0 0
        %1797 = vmatpush2.bf16.msra.mxu0 0
        %1798 = vmatprep.subr.bf16.mxu0 0
        %1799 = vmatpush2.bf16.msra.mxu0 0
        %1800 = vmatprep.subr.bf16.mxu0 0
        %1801 = vmatpush2.bf16.msra.mxu0 0
        %1802 = vmatprep.subr.bf16.mxu0 0
        %1803 = vmatpush2.bf16.msra.mxu0 0
        %1804 = vmatprep.subr.bf16.mxu0 0
        %1805 = vmatpush2.bf16.msra.mxu0 0
        %1806 = vmatprep.subr.bf16.mxu0 0
        %1807 = vmatpush2.bf16.msra.mxu0 0
        %1808 = vmatprep.subr.bf16.mxu0 0
        %1809 = vmatpush2.bf16.msra.mxu0 0
        %1810 = vmatprep.subr.bf16.mxu0 0
        %1811 = vmatpush2.bf16.msra.mxu0 0
        %1812 = vmatprep.mubr.bf16.mxu0 0
        %1813 = vmatmul.mubr.bf16.gmra.mxu0 %v1775
        %v1814 = vpop.f32.mrf.mxu0
        %v1815 = vadd.f32 0.0, %v1814
        %v1816 = vpop.f32.mrf.mxu0
        %v1817 = vpop.f32.mrf.mxu0
        %v1818 = vpop.f32.mrf.mxu0
        %1819 = vdwg.mxu0
        %1820 = vrot.lane.b32.xlu0 %v981, 104
        %v1821 = vpop.permute.xlu0 %1820
        %v1823 = vsel %vm985, %v1771, 0
        %v1826 = vsel %vm1110, %v1821, 0
        %1828 = vmatprep.subr.bf16.mxu0 0
        %1829 = vmatpush1.bf16.msra.mxu0 0
        %1830 = vmatprep.subr.bf16.mxu0 0
        %1831 = vmatpush1.bf16.msra.mxu0 0
        %1832 = vmatprep.subr.bf16.mxu0 0
        %1833 = vmatpush1.bf16.msra.mxu0 0
        %1834 = vmatprep.subr.bf16.mxu0 0
        %1835 = vmatpush1.bf16.msra.mxu0 0
        %1836 = vmatprep.subr.bf16.mxu0 0
        %1837 = vmatpush1.bf16.msra.mxu0 0
        %1838 = vmatprep.subr.bf16.mxu0 0
        %1839 = vmatpush1.bf16.msra.mxu0 0
        %1840 = vmatprep.subr.bf16.mxu0 0
        %1841 = vmatpush1.bf16.msra.mxu0 0
        %1842 = vmatprep.subr.bf16.mxu0 0
        %1843 = vmatpush1.bf16.msra.mxu0 %v1826
        %1844 = vmatprep.subr.bf16.mxu0 0
        %1845 = vmatpush2.bf16.msra.mxu0 0
        %1846 = vmatprep.subr.bf16.mxu0 0
        %1847 = vmatpush2.bf16.msra.mxu0 0
        %1848 = vmatprep.subr.bf16.mxu0 0
        %1849 = vmatpush2.bf16.msra.mxu0 0
        %1850 = vmatprep.subr.bf16.mxu0 0
        %1851 = vmatpush2.bf16.msra.mxu0 0
        %1852 = vmatprep.subr.bf16.mxu0 0
        %1853 = vmatpush2.bf16.msra.mxu0 0
        %1854 = vmatprep.subr.bf16.mxu0 0
        %1855 = vmatpush2.bf16.msra.mxu0 0
        %1856 = vmatprep.subr.bf16.mxu0 0
        %1857 = vmatpush2.bf16.msra.mxu0 0
        %1858 = vmatprep.subr.bf16.mxu0 0
        %1859 = vmatpush2.bf16.msra.mxu0 0
        %1860 = vmatprep.mubr.bf16.mxu0 0
        %1861 = vmatmul.mubr.bf16.gmra.mxu0 %v1823
        %v1862 = vpop.f32.mrf.mxu0
        %v1863 = vadd.f32 0.0, %v1862
        %v1864 = vpop.f32.mrf.mxu0
        %v1865 = vpop.f32.mrf.mxu0
        %v1866 = vpop.f32.mrf.mxu0
        %1867 = vdwg.mxu0
        %1870 = vrot.lane.b32.xlu0 %v1370, 8
        %v1871 = vpop.permute.xlu0 %1870
        %1872 = vrot.lane.b32.xlu0 %v1419, 8
        %v1873 = vpop.permute.xlu0 %1872
        %1878 = vrot.lane.b32.xlu0 %v1593, 16
        %v1879 = vpop.permute.xlu0 %1878
        %1880 = vrot.lane.b32.xlu0 %v1641, 16
        %v1881 = vpop.permute.xlu0 %1880
        %1886 = vrot.lane.b32.xlu0 %v1815, 24
        %v1887 = vpop.permute.xlu0 %1886
        %1888 = vrot.lane.b32.xlu0 %v1863, 24
        %v1889 = vpop.permute.xlu0 %1888
        %v1892 = vsel %vm985, %v1149, %v1871
        %v1893 = vsel %vm985, %v1195, %v1873
        %vm1894 = vcmask 130048
        %v1895 = vsel %vm1894, %v1892, %v1879
        %v1896 = vsel %vm1894, %v1893, %v1881
        %vm1897 = vcmask 195584
        %v1898 = vsel %vm1897, %v1895, %v1887
        %v1899 = vsel %vm1897, %v1896, %v1889
        %v1900 = vpack.c.bf16 %v1899, %v1898
        %v1901 = vld [vmem:[%s793] sm:$0xf]
        %v1902 = vld [vmem:[%s793 + $0x4] sm:$0xf]
        %v1903 = vld [vmem:[%s793 + $0x8] sm:$0xf]
        %v1904 = vld [vmem:[%s793 + $0xc] sm:$0xf]
        %v1905 = vld [vmem:[%s796] sm:$0x1]
        %v1907 = vlaneseq
        %v1908 = vshrl.u32 %v1907, 7
        %v1909 = vsub.s32 0, %v1908
        %v1910 = vrot.slane %v1905, %v1909
        %v1916 = vunpack.c.l.b16 %v1901
        %v1917 = vunpack.c.l.b16 %v1902
        %v1918 = vunpack.c.l.b16 %v1903
        %v1919 = vunpack.c.l.b16 %v1904
        %v1920 = vpack.c.b16 %v1917, %v1916
        %v1921 = vpack.c.b16 %v1919, %v1918
        %v1925 = vsel %vm866, %v1900, 0
        %1927 = vmatprep.subr.bf16.mxu0 0
        %1928 = vmatpush1.bf16.msra.mxu0 0
        %1929 = vmatprep.subr.bf16.mxu0 0
        %1930 = vmatpush1.bf16.msra.mxu0 0
        %1931 = vmatprep.subr.bf16.mxu0 0
        %1932 = vmatpush1.bf16.msra.mxu0 0
        %1933 = vmatprep.subr.bf16.mxu0 0
        %1934 = vmatpush1.bf16.msra.mxu0 0
        %1935 = vmatprep.subr.bf16.mxu0 0
        %1936 = vmatpush1.bf16.msra.mxu0 0
        %1937 = vmatprep.subr.bf16.mxu0 0
        %1938 = vmatpush1.bf16.msra.mxu0 0
        %1939 = vmatprep.subr.bf16.mxu0 0
        %1940 = vmatpush1.bf16.msra.mxu0 %v1921
        %1941 = vmatprep.subr.bf16.mxu0 0
        %1942 = vmatpush1.bf16.msra.mxu0 %v1920
        %1943 = vmatprep.subr.bf16.mxu0 0
        %1944 = vmatpush2.bf16.msra.mxu0 0
        %1945 = vmatprep.subr.bf16.mxu0 0
        %1946 = vmatpush2.bf16.msra.mxu0 0
        %1947 = vmatprep.subr.bf16.mxu0 0
        %1948 = vmatpush2.bf16.msra.mxu0 0
        %1949 = vmatprep.subr.bf16.mxu0 0
        %1950 = vmatpush2.bf16.msra.mxu0 0
        %1951 = vmatprep.subr.bf16.mxu0 0
        %1952 = vmatpush2.bf16.msra.mxu0 0
        %1953 = vmatprep.subr.bf16.mxu0 0
        %1954 = vmatpush2.bf16.msra.mxu0 0
        %1955 = vmatprep.subr.bf16.mxu0 0
        %1956 = vmatpush2.bf16.msra.mxu0 0
        %1957 = vmatprep.subr.bf16.mxu0 0
        %1958 = vmatpush2.bf16.msra.mxu0 0
        %1959 = vmatprep.mubr.bf16.mxu0 0
        %1960 = vmatmul.mubr.bf16.gmra.mxu0 %v1925
        %v1961 = vpop.f32.mrf.mxu0
        %v1962 = vadd.f32 %v1910, %v1961
        %v1963 = vpop.f32.mrf.mxu0
        %v1964 = vpop.f32.mrf.mxu0
        %v1965 = vadd.f32 %v1910, %v1964
        %v1966 = vpop.f32.mrf.mxu0
        %1967 = vdwg.mxu0
        %v1968 = vadd.f32 %v835, %v1962
        %v1969 = vadd.f32 %v836, %v1965
        %v1970 = vld [vmem:[%s799] sm:$0x1]
        %v1971 = vld [vmem:[%s802] sm:$0x1]
        %v1972 = vsel %vm866, %v1968, 0.0
        %1973 = vadd.xlane.f32.xlu0 %v1972
        %v1974 = vpop.xlane.xlu0 %1973
        %v1975 = vsel %vm866, %v1969, 0.0
        %1976 = vadd.xlane.f32.xlu0 %v1975
        %v1977 = vpop.xlane.xlu0 %1976
        %v1978 = vrcp.pop 32.0
        %v1979 = vmul.f32 %v1974, %v1978
        %v1980 = vmul.f32 %v1977, %v1978
        %v1981 = vsub.f32 %v1968, %v1979
        %v1982 = vsub.f32 %v1969, %v1980
        %v1983 = vmul.f32 %v1981, %v1981
        %v1984 = vmul.f32 %v1982, %v1982
        %v1985 = vsel %vm866, %v1983, 0.0
        %1986 = vadd.xlane.f32.xlu0 %v1985
        %v1987 = vpop.xlane.xlu0 %1986
        %v1988 = vsel %vm866, %v1984, 0.0
        %1989 = vadd.xlane.f32.xlu0 %v1988
        %v1990 = vpop.xlane.xlu0 %1989
        %v1991 = vmul.f32 %v1987, %v1978
        %v1992 = vmul.f32 %v1990, %v1978
        %v1993 = vadd.f32 %v1991, 1e-05
        %v1994 = vadd.f32 %v1992, 1e-05
        %v1995 = vrsqrt.pop %v1993
        %v1996 = vrsqrt.pop %v1994
        %v1997 = vmul.f32 %v1981, %v1995
        %v1998 = vmul.f32 %v1982, %v1996
        %v2000 = vlaneseq
        %v2001 = vshrl.u32 %v2000, 7
        %v2002 = vsub.s32 0, %v2001
        %v2003 = vrot.slane %v1970, %v2002
        %v2005 = vmul.f32 %v1997, %v2003
        %v2006 = vmul.f32 %v1998, %v2003
        %v2008 = vlaneseq
        %v2009 = vshrl.u32 %v2008, 7
        %v2010 = vsub.s32 0, %v2009
        %v2011 = vrot.slane %v1971, %v2010
        %v2013 = vadd.f32 %v2005, %v2011
        %v2014 = vadd.f32 %v2006, %v2011
        %v2015 = vpack.c.bf16 %v2014, %v2013
        %v2016 = vld [vmem:[%s807] sm:$0xf]
        %v2017 = vld [vmem:[%s807 + $0x4] sm:$0xf]
        %v2018 = vld [vmem:[%s807 + $0x8] sm:$0xf]
        %v2019 = vld [vmem:[%s807 + $0xc] sm:$0xf]
        %v2020 = vld [vmem:[%s645] sm:$0x1]
        %v2022 = vlaneseq
        %v2023 = vshrl.u32 %v2022, 7
        %v2024 = vsub.s32 0, %v2023
        %v2025 = vrot.slane %v2020, %v2024
        %v2031 = vunpack.c.l.b16 %v2016
        %v2032 = vunpack.c.l.b16 %v2017
        %v2033 = vunpack.c.l.b16 %v2018
        %v2034 = vunpack.c.l.b16 %v2019
        %v2035 = vpack.c.b16 %v2032, %v2031
        %v2036 = vpack.c.b16 %v2034, %v2033
        %v2040 = vsel %vm866, %v2015, 0
        %2042 = vmatprep.subr.bf16.mxu0 0
        %2043 = vmatpush1.bf16.msra.mxu0 0
        %2044 = vmatprep.subr.bf16.mxu0 0
        %2045 = vmatpush1.bf16.msra.mxu0 0
        %2046 = vmatprep.subr.bf16.mxu0 0
        %2047 = vmatpush1.bf16.msra.mxu0 0
        %2048 = vmatprep.subr.bf16.mxu0 0
        %2049 = vmatpush1.bf16.msra.mxu0 0
        %2050 = vmatprep.subr.bf16.mxu0 0
        %2051 = vmatpush1.bf16.msra.mxu0 0
        %2052 = vmatprep.subr.bf16.mxu0 0
        %2053 = vmatpush1.bf16.msra.mxu0 0
        %2054 = vmatprep.subr.bf16.mxu0 0
        %2055 = vmatpush1.bf16.msra.mxu0 %v2036
        %2056 = vmatprep.subr.bf16.mxu0 0
        %2057 = vmatpush1.bf16.msra.mxu0 %v2035
        %2058 = vmatprep.subr.bf16.mxu0 0
        %2059 = vmatpush2.bf16.msra.mxu0 0
        %2060 = vmatprep.subr.bf16.mxu0 0
        %2061 = vmatpush2.bf16.msra.mxu0 0
        %2062 = vmatprep.subr.bf16.mxu0 0
        %2063 = vmatpush2.bf16.msra.mxu0 0
        %2064 = vmatprep.subr.bf16.mxu0 0
        %2065 = vmatpush2.bf16.msra.mxu0 0
        %2066 = vmatprep.subr.bf16.mxu0 0
        %2067 = vmatpush2.bf16.msra.mxu0 0
        %2068 = vmatprep.subr.bf16.mxu0 0
        %2069 = vmatpush2.bf16.msra.mxu0 0
        %2070 = vmatprep.subr.bf16.mxu0 0
        %2071 = vmatpush2.bf16.msra.mxu0 0
        %2072 = vmatprep.subr.bf16.mxu0 0
        %2073 = vmatpush2.bf16.msra.mxu0 0
        %2074 = vmatprep.mubr.bf16.mxu0 0
        %2075 = vmatmul.mubr.bf16.gmra.mxu0 %v2040
        %v2076 = vpop.f32.mrf.mxu0
        %v2077 = vadd.f32 %v2025, %v2076
        %v2078 = vpop.f32.mrf.mxu0
        %v2079 = vpop.f32.mrf.mxu0
        %v2080 = vadd.f32 %v2025, %v2079
        %v2081 = vpop.f32.mrf.mxu0
        %2082 = vdwg.mxu0
        %vm2083 = vcmp.gt.f32.partialorder %v2077, 0.0
        %vm2084 = vcmp.gt.f32.partialorder %v2080, 0.0
        %v2085 = vmul.f32 %v2077, 0.01
        %v2086 = vmul.f32 %v2080, 0.01
        %v2087 = vsel %vm2083, %v2077, %v2085
        %v2088 = vsel %vm2084, %v2080, %v2086
        %v2089 = vpack.c.bf16 %v2088, %v2087
        %v2090 = vld [vmem:[%s812] sm:$0xf]
        %v2091 = vld [vmem:[%s812 + $0x4] sm:$0xf]
        %v2092 = vld [vmem:[%s812 + $0x8] sm:$0xf]
        %v2093 = vld [vmem:[%s812 + $0xc] sm:$0xf]
        %v2094 = vld [vmem:[%s812 + $0x10] sm:$0xf]
        %v2095 = vld [vmem:[%s812 + $0x14] sm:$0xf]
        %v2096 = vld [vmem:[%s812 + $0x18] sm:$0xf]
        %v2097 = vld [vmem:[%s812 + $0x1c] sm:$0xf]
        %v2098 = vld [vmem:[%s653] sm:$0x1]
        %v2100 = vlaneseq
        %v2101 = vshrl.u32 %v2100, 7
        %v2102 = vsub.s32 0, %v2101
        %v2103 = vrot.slane %v2098, %v2102
        %v2113 = vunpack.c.l.b16 %v2090
        %v2114 = vunpack.c.l.b16 %v2091
        %v2115 = vunpack.c.l.b16 %v2092
        %v2116 = vunpack.c.l.b16 %v2093
        %v2117 = vunpack.c.l.b16 %v2094
        %v2118 = vunpack.c.l.b16 %v2095
        %v2119 = vunpack.c.l.b16 %v2096
        %v2120 = vunpack.c.l.b16 %v2097
        %v2121 = vpack.c.b16 %v2114, %v2113
        %v2122 = vpack.c.b16 %v2116, %v2115
        %v2123 = vpack.c.b16 %v2118, %v2117
        %v2124 = vpack.c.b16 %v2120, %v2119
        %vm2129 = vcmask 523264
        %v2131 = vsel %vm2129, %v2089, 0
        %2133 = vmatprep.subr.bf16.mxu0 0
        %2134 = vmatpush1.bf16.msra.mxu0 0
        %2135 = vmatprep.subr.bf16.mxu0 0
        %2136 = vmatpush1.bf16.msra.mxu0 0
        %2137 = vmatprep.subr.bf16.mxu0 0
        %2138 = vmatpush1.bf16.msra.mxu0 0
        %2139 = vmatprep.subr.bf16.mxu0 0
        %2140 = vmatpush1.bf16.msra.mxu0 0
        %2141 = vmatprep.subr.bf16.mxu0 0
        %2142 = vmatpush1.bf16.msra.mxu0 %v2124
        %2143 = vmatprep.subr.bf16.mxu0 0
        %2144 = vmatpush1.bf16.msra.mxu0 %v2123
        %2145 = vmatprep.subr.bf16.mxu0 0
        %2146 = vmatpush1.bf16.msra.mxu0 %v2122
        %2147 = vmatprep.subr.bf16.mxu0 0
        %2148 = vmatpush1.bf16.msra.mxu0 %v2121
        %2149 = vmatprep.subr.bf16.mxu0 0
        %2150 = vmatpush2.bf16.msra.mxu0 0
        %2151 = vmatprep.subr.bf16.mxu0 0
        %2152 = vmatpush2.bf16.msra.mxu0 0
        %2153 = vmatprep.subr.bf16.mxu0 0
        %2154 = vmatpush2.bf16.msra.mxu0 0
        %2155 = vmatprep.subr.bf16.mxu0 0
        %2156 = vmatpush2.bf16.msra.mxu0 0
        %2157 = vmatprep.subr.bf16.mxu0 0
        %2158 = vmatpush2.bf16.msra.mxu0 0
        %2159 = vmatprep.subr.bf16.mxu0 0
        %2160 = vmatpush2.bf16.msra.mxu0 0
        %2161 = vmatprep.subr.bf16.mxu0 0
        %2162 = vmatpush2.bf16.msra.mxu0 0
        %2163 = vmatprep.subr.bf16.mxu0 0
        %2164 = vmatpush2.bf16.msra.mxu0 0
        %2165 = vmatprep.mubr.bf16.mxu0 0
        %2166 = vmatmul.mubr.bf16.gmra.mxu0 %v2131
        %v2167 = vpop.f32.mrf.mxu0
        %v2168 = vadd.f32 %v2103, %v2167
        %v2169 = vpop.f32.mrf.mxu0
        %v2170 = vpop.f32.mrf.mxu0
        %v2171 = vadd.f32 %v2103, %v2170
        %v2172 = vpop.f32.mrf.mxu0
        %2173 = vdwg.mxu0
        %v2174 = vadd.f32 %v2013, %v2168
        %v2175 = vadd.f32 %v2014, %v2171
        %v2176 = vld [vmem:[%s815] sm:$0x1]
        %v2177 = vld [vmem:[%s818] sm:$0x1]
        %v2178 = vsel %vm866, %v2174, 0.0
        %2179 = vadd.xlane.f32.xlu0 %v2178
        %v2180 = vpop.xlane.xlu0 %2179
        %v2181 = vsel %vm866, %v2175, 0.0
        %2182 = vadd.xlane.f32.xlu0 %v2181
        %v2183 = vpop.xlane.xlu0 %2182
        %v2184 = vmul.f32 %v2180, %v1978
        %v2185 = vmul.f32 %v2183, %v1978
        %v2186 = vsub.f32 %v2174, %v2184
        %v2187 = vsub.f32 %v2175, %v2185
        %v2188 = vmul.f32 %v2186, %v2186
        %v2189 = vmul.f32 %v2187, %v2187
        %v2190 = vsel %vm866, %v2188, 0.0
        %2191 = vadd.xlane.f32.xlu0 %v2190
        %v2192 = vpop.xlane.xlu0 %2191
        %v2193 = vsel %vm866, %v2189, 0.0
        %2194 = vadd.xlane.f32.xlu0 %v2193
        %v2195 = vpop.xlane.xlu0 %2194
        %v2196 = vmul.f32 %v2192, %v1978
        %v2197 = vmul.f32 %v2195, %v1978
        %v2198 = vadd.f32 %v2196, 1e-05
        %v2199 = vadd.f32 %v2197, 1e-05
        %v2200 = vrsqrt.pop %v2198
        %v2201 = vrsqrt.pop %v2199
        %v2202 = vmul.f32 %v2186, %v2200
        %v2203 = vmul.f32 %v2187, %v2201
        %v2205 = vlaneseq
        %v2206 = vshrl.u32 %v2205, 7
        %v2207 = vsub.s32 0, %v2206
        %v2208 = vrot.slane %v2176, %v2207
        %v2210 = vmul.f32 %v2202, %v2208
        %v2211 = vmul.f32 %v2203, %v2208
        %v2213 = vlaneseq
        %v2214 = vshrl.u32 %v2213, 7
        %v2215 = vsub.s32 0, %v2214
        %v2216 = vrot.slane %v2177, %v2215
        %v2218 = vadd.f32 %v2210, %v2216
        %v2219 = vadd.f32 %v2211, %v2216
        %2220 = vst.msk [vmem:[%s823] sm:$0xff] %vm866, %v2218
        %2221 = vst.msk [vmem:[%s823 + $0x8] sm:$0xff] %vm866, %v2219
        %s2222 = smul.u32 2, %s37
        %p2223 = scmp.lt.s32.totalorder %s2222, 1
        %s2224 = scalar_select %p2223, %s2222, 1
        %s2225 = smul.addr %s2224, 8
        %s2226 = scalar_lea.vmem %s16, %s2225
        // Predicated region
        $region97: #{graph_transformer_encoder.1} parent=83 // pred_check
          %p2227 = pneg %p479
        $region98: #{graph_transformer_encoder.1} parent=83 // pred_check_branch
          %2229 = sbr.rel (%p2227) target = $region100
        $region99: #{graph_transformer_encoder.1} parent=83 // pred_region
          %s2230 = smul.u32 2, %s37
        $region100: #{graph_transformer_encoder.1} parent=83 // pred_fallthru
          _
        // Predicated region
        $region101: #{graph_transformer_encoder.1} parent=83 // pred_check
          %p2231 = pneg %p479
        $region102: #{graph_transformer_encoder.1} parent=83 // pred_check_branch
          %2233 = sbr.rel (%p2231) target = $region104
        $region103: #{graph_transformer_encoder.1} parent=83 // pred_region
          %s2234 = smul.u32 2, %s37
          %p2235 = scmp.lt.s32.totalorder %s2234, 1
          %s2236 = scalar_select %p2235, %s2234, 1
          %s2237 = smul.addr %s2236, 8
          %s2238 = scalar_lea.vmem %s16, %s2237
        $region104: #{graph_transformer_encoder.1} parent=83 // pred_fallthru
          _
      $region84: #{graph_transformer_encoder.1} parent=5 // pred_fallthru
        _
      %p2239 = scmp.le.s32.totalorder 2, %s28
      // Predicated region
      $region105: #{graph_transformer_encoder.1} parent=5 // pred_check
        %p2240 = pneg %p2239
      $region106: #{graph_transformer_encoder.1} parent=5 // pred_check_branch
        %2242 = sbr.rel (%p2240) target = $region108
      $region107: #{graph_transformer_encoder.1} parent=5 // pred_region
        %s2243 = ssub.s32 %s28, 2
      $region108: #{graph_transformer_encoder.1} parent=5 // pred_fallthru
        _
    $region6: #{graph_transformer_encoder.1} parent=1 // loop_footer
      %s32 = sadd.s32 1, %s28
    $region7: #{graph_transformer_encoder.1} parent=1 // loop_footer_branch
      %27 = sbr.rel target = $region3
    $region8: #{graph_transformer_encoder.1} parent=1 // loop_exit
      _
    %2244 = vsyncpa [#allocation3], 1
    %s2245 = scalar_lea.sflag [#allocation3], 1
    %2246 = vsyncpa %s2245, 1
    %2247 = vsyncpa [#allocation5], 1
    %s2248 = scalar_lea.sflag [#allocation5], 1
    %2249 = vsyncpa %s2248, 1

</llo_original>
